<compile_context>
chip_gen: v7x
topology: tpu7x:2x2x1
jax: 0.10.0
libtpu: 0.0.40
codegen_flags: <defaults>
</compile_context>

<pallas_src>
import jax
import jax.numpy as jnp
from jax import lax
from jax.experimental import pallas as pl
from jax.experimental.pallas import tpu as pltpu


def lstm_head_kernel(x_ref, wih_ref, whh_ref, b_ref, wl_ref, bl_ref, out_ref, xg_ref):
    """Fused input projection + LSTM recurrence + padded linear head.

    x_ref   : (T, B, E)   bf16  time-major embedded inputs
    wih_ref : (E, 4H)     bf16  input->gates weights (transposed)
    whh_ref : (H, 4H)     bf16  hidden->gates weights (transposed)
    b_ref   : (1, 4H)     f32   b_ih + b_hh
    wl_ref  : (H, C_PAD)  f32   classifier weights (transposed, zero-padded to 128 lanes)
    bl_ref  : (1, C_PAD)  f32   classifier bias (zero-padded)
    out_ref : (B, C_PAD)  f32   padded logits
    xg_ref  : (T*B, 4H)   f32   VMEM scratch: fused input projections
    """
    T, B, E = x_ref.shape
    H = whh_ref.shape[0]

    # ---- Fused input projection: one (T*B, E) @ (E, 4H) MXU pass + bias. ----
    x2d = x_ref[...].reshape(T * B, E)                           # bf16, layout-safe merge
    xg_ref[...] = (jnp.dot(x2d, wih_ref[...], preferred_element_type=jnp.float32)
                   + b_ref[...])

    whh = whh_ref[...]                                            # bf16 (H, 4H), loaded once

    # ---- Sequential LSTM recurrence (PyTorch gate order: i, f, g, o). ----
    def step(t, carry):
        h, c = carry
        row = pl.multiple_of(t * B, B)
        xg_t = xg_ref[pl.ds(row, B), :]                          # (B, 4H) f32
        gates = xg_t + jnp.dot(h.astype(jnp.bfloat16), whh,
                               preferred_element_type=jnp.float32)
        i_g = jax.nn.sigmoid(gates[:, 0 * H:1 * H])
        f_g = jax.nn.sigmoid(gates[:, 1 * H:2 * H])
        g_g = jnp.tanh(gates[:, 2 * H:3 * H])
        o_g = jax.nn.sigmoid(gates[:, 3 * H:4 * H])
        c_new = f_g * c + i_g * g_g
        h_new = o_g * jnp.tanh(c_new)
        return h_new, c_new

    h0 = jnp.zeros((B, H), jnp.float32)
    c0 = jnp.zeros((B, H), jnp.float32)
    h_final, _ = lax.fori_loop(0, T, step, (h0, c0), unroll=True)

    # ---- Classifier head (lane-dense, unmasked store). ----
    out_ref[...] = (jnp.dot(h_final, wl_ref[...], preferred_element_type=jnp.float32)
                    + bl_ref[...])


def simple_lstm_fixed_len_net(x_ids, params):
    """JAX wrapper reproducing SimpleLSTMFixedLenNet.forward (eval mode)."""
    emb_table = params["embedding"]                 # (V, E) f32, row 0 zeroed (padding_idx=0)
    w_ih_t = params["w_ih_t"].astype(jnp.bfloat16)  # (E, 4H)
    w_hh_t = params["w_hh_t"].astype(jnp.bfloat16)  # (H, 4H)
    b_gates = params["b_gates"]                     # (1, 4H) f32
    w_lin_t = params["w_lin_t"]                     # (H, C)  f32
    b_lin = params["b_lin"]                         # (1, C)  f32

    B, T = x_ids.shape
    E = emb_table.shape[1]
    H = w_hh_t.shape[0]
    C = w_lin_t.shape[1]
    C_PAD = ((C + 127) // 128) * 128

    # Pad the classifier to a full 128-lane output so the kernel's final store is
    # an unmasked vst; slice back to C below.
    w_lin_pad = jnp.zeros((H, C_PAD), jnp.float32).at[:, :C].set(w_lin_t)
    b_lin_pad = jnp.zeros((1, C_PAD), jnp.float32).at[:, :C].set(b_lin)

    # Embedding lookup directly in time-major order (transpose cheap int32 ids,
    # not the f32 activations). Dropout: identity in eval mode.
    x_tbe = jnp.take(emb_table, x_ids.T, axis=0).astype(jnp.bfloat16)   # (T, B, E)

    out_pad = pl.pallas_call(
        lstm_head_kernel,
        out_shape=jax.ShapeDtypeStruct((B, C_PAD), jnp.float32),
        in_specs=[pl.BlockSpec(memory_space=pltpu.MemorySpace.VMEM)] * 6,
        out_specs=pl.BlockSpec(memory_space=pltpu.MemorySpace.VMEM),
        scratch_shapes=[pltpu.VMEM((T * B, 4 * H), jnp.float32)],
    )(x_tbe, w_ih_t, w_hh_t, b_gates, w_lin_pad, b_lin_pad)

    return out_pad[:, :C]


def init_params(key, vocab_size, embedding_dim, hidden_dim, num_classes):
    """Deterministic parameter init matching the PyTorch module's shapes."""
    k_emb, k_wih, k_whh, k_bih, k_bhh, k_wl, k_bl = jax.random.split(key, 7)
    H = hidden_dim
    bound = 1.0 / jnp.sqrt(jnp.float32(H))

    embedding = jax.random.normal(k_emb, (vocab_size, embedding_dim), jnp.float32)
    embedding = embedding.at[0].set(0.0)  # padding_idx=0

    w_ih = jax.random.uniform(k_wih, (4 * H, embedding_dim), jnp.float32, -bound, bound)
    w_hh = jax.random.uniform(k_whh, (4 * H, H), jnp.float32, -bound, bound)
    b_ih = jax.random.uniform(k_bih, (4 * H,), jnp.float32, -bound, bound)
    b_hh = jax.random.uniform(k_bhh, (4 * H,), jnp.float32, -bound, bound)

    w_lin = jax.random.uniform(k_wl, (num_classes, H), jnp.float32, -bound, bound)
    b_lin = jax.random.uniform(k_bl, (num_classes,), jnp.float32, -bound, bound)

    return {
        "embedding": embedding,
        "w_ih_t": w_ih.T,                          # (E, 4H)
        "w_hh_t": w_hh.T,                          # (H, 4H)
        "b_gates": (b_ih + b_hh)[None, :],         # (1, 4H)
        "w_lin_t": w_lin.T,                        # (H, C)
        "b_lin": b_lin[None, :],                   # (1, C)
    }


def reference_forward(x_ids, params):
    """Pure-JAX f32 reference (mirrors PyTorch nn.LSTM math) for correctness check."""
    emb = params["embedding"]
    x = jnp.take(emb, x_ids, axis=0).astype(jnp.float32)  # (B, T, E)
    B, T, _ = x.shape
    H = params["w_hh_t"].shape[0]
    h = jnp.zeros((B, H), jnp.float32)
    c = jnp.zeros((B, H), jnp.float32)
    for t in range(T):
        gates = (x[:, t, :] @ params["w_ih_t"] + h @ params["w_hh_t"]
                 + params["b_gates"])
        i_g = jax.nn.sigmoid(gates[:, 0 * H:1 * H])
        f_g = jax.nn.sigmoid(gates[:, 1 * H:2 * H])
        g_g = jnp.tanh(gates[:, 2 * H:3 * H])
        o_g = jax.nn.sigmoid(gates[:, 3 * H:4 * H])
        c = f_g * c + i_g * g_g
        h = o_g * jnp.tanh(c)
    return h @ params["w_lin_t"] + params["b_lin"]


if __name__ == "__main__":
    VOCAB = 100
    EMB_DIM = 128
    HIDDEN = 128
    NUM_CLASSES = 8
    B, T = 8, 8

    key = jax.random.PRNGKey(0)
    k_params, k_ids = jax.random.split(key)

    params = init_params(k_params, VOCAB, EMB_DIM, HIDDEN, NUM_CLASSES)
    x_ids = jax.random.randint(k_ids, (B, T), 0, VOCAB, dtype=jnp.int32)

    logits = simple_lstm_fixed_len_net(x_ids, params)
    logits = jax.block_until_ready(logits)

    ref = jax.block_until_ready(reference_forward(x_ids, params))
    assert logits.shape == (B, NUM_CLASSES)
    assert bool(jnp.all(jnp.isfinite(logits)))
    # bf16 matmul inputs + f32 accumulation: error stays well inside 2e-2 at T=8.
    assert bool(jnp.allclose(logits, ref, rtol=2e-2, atol=2e-2))

    print("KERNEL_OK")
</pallas_src>

<mosaic_0001>
module attributes {stable_mosaic.version = 11 : i64} {
  func.func @lstm_head_kernel(%arg0: memref<8x8x128xbf16, #tpu.memory_space<vmem>>, %arg1: memref<128x512xbf16, #tpu.memory_space<vmem>>, %arg2: memref<128x512xbf16, #tpu.memory_space<vmem>>, %arg3: memref<1x512xf32, #tpu.memory_space<vmem>>, %arg4: memref<128x128xf32, #tpu.memory_space<vmem>>, %arg5: memref<1x128xf32, #tpu.memory_space<vmem>>, %arg6: memref<8x128xf32, #tpu.memory_space<vmem>>, %arg7: memref<64x512xf32, #tpu.memory_space<vmem>>) attributes {dimension_semantics = [], scalar_prefetch = 0 : i64, scratch_operands = 1 : i64, tpu.core_type = #tpu.core_type<tc>} {
    %c0 = arith.constant 0 : index
    %c0_0 = arith.constant 0 : index
    %c0_1 = arith.constant 0 : index
    %0 = vector.load %arg0[%c0, %c0_0, %c0_1] : memref<8x8x128xbf16, #tpu.memory_space<vmem>>, vector<8x8x128xbf16>
    %1 = vector.shape_cast %0 : vector<8x8x128xbf16> to vector<64x128xbf16>
    %c0_2 = arith.constant 0 : index
    %c0_3 = arith.constant 0 : index
    %2 = vector.load %arg1[%c0_2, %c0_3] : memref<128x512xbf16, #tpu.memory_space<vmem>>, vector<128x512xbf16>
    %cst = arith.constant dense<0.000000e+00> : vector<64x512xf32>
    %3 = tpu.matmul %1, %2, %cst {dimension_numbers = #tpu.dot_dimension_numbers<[1], [0], [0], [1], [0, 0, 1, 1], [], []>} : vector<64x128xbf16>, vector<128x512xbf16>, vector<64x512xf32> -> vector<64x512xf32>
    %c0_4 = arith.constant 0 : index
    %c0_5 = arith.constant 0 : index
    %4 = vector.load %arg3[%c0_4, %c0_5] : memref<1x512xf32, #tpu.memory_space<vmem>>, vector<1x512xf32>
    %5 = vector.broadcast %4 : vector<1x512xf32> to vector<64x512xf32>
    %6 = arith.addf %3, %5 : vector<64x512xf32>
    %c0_6 = arith.constant 0 : index
    %c0_7 = arith.constant 0 : index
    %7 = vector.load %arg7[%c0_6, %c0_7] : memref<64x512xf32, #tpu.memory_space<vmem>>, vector<64x512xf32>
    tpu.vector_store %arg7[%c0_6, %c0_7], %6 {strides = array<i32>} : memref<64x512xf32, #tpu.memory_space<vmem>>, vector<64x512xf32>,
    %c0_8 = arith.constant 0 : index
    %c0_9 = arith.constant 0 : index
    %8 = vector.load %arg2[%c0_8, %c0_9] : memref<128x512xbf16, #tpu.memory_space<vmem>>, vector<128x512xbf16>
    %cst_10 = arith.constant 0.000000e+00 : f32
    %9 = vector.broadcast %cst_10 : f32 to vector<8x128xf32>
    %cst_11 = arith.constant 0.000000e+00 : f32
    %10 = vector.broadcast %cst_11 : f32 to vector<8x128xf32>
    %c0_i32 = arith.constant 0 : i32
    %c8_i32 = arith.constant 8 : i32
    %11 = arith.muli %c0_i32, %c8_i32 : i32
    %12 = tpu.assume_multiple %11, 8 : i32
    %13 = arith.index_cast %12 : i32 to index
    %c0_12 = arith.constant 0 : index
    %14 = vector.load %arg7[%13, %c0_12] : memref<64x512xf32, #tpu.memory_space<vmem>>, vector<8x512xf32>
    %15 = arith.truncf %9 : vector<8x128xf32> to vector<8x128xbf16>
    %cst_13 = arith.constant dense<0.000000e+00> : vector<8x512xf32>
    %16 = tpu.matmul %15, %8, %cst_13 {dimension_numbers = #tpu.dot_dimension_numbers<[1], [0], [0], [1], [0, 0, 1, 1], [], []>} : vector<8x128xbf16>, vector<128x512xbf16>, vector<8x512xf32> -> vector<8x512xf32>
    %17 = arith.addf %14, %16 : vector<8x512xf32>
    %18 = vector.extract_strided_slice %17 {offsets = [0, 0], sizes = [8, 128], strides = [1, 1]} : vector<8x512xf32> to vector<8x128xf32>
    %19 = arith.negf %18 : vector<8x128xf32>
    %20 = math.exp %19 : vector<8x128xf32>
    %cst_14 = arith.constant 1.000000e+00 : f32
    %21 = vector.broadcast %cst_14 : f32 to vector<8x128xf32>
    %22 = arith.addf %21, %20 : vector<8x128xf32>
    %23 = arith.divf %21, %22 : vector<8x128xf32>
    %24 = vector.extract_strided_slice %17 {offsets = [0, 128], sizes = [8, 128], strides = [1, 1]} : vector<8x512xf32> to vector<8x128xf32>
    %25 = arith.negf %24 : vector<8x128xf32>
    %26 = math.exp %25 : vector<8x128xf32>
    %cst_15 = arith.constant 1.000000e+00 : f32
    %27 = vector.broadcast %cst_15 : f32 to vector<8x128xf32>
    %28 = arith.addf %27, %26 : vector<8x128xf32>
    %29 = arith.divf %27, %28 : vector<8x128xf32>
    %30 = vector.extract_strided_slice %17 {offsets = [0, 256], sizes = [8, 128], strides = [1, 1]} : vector<8x512xf32> to vector<8x128xf32>
    %31 = math.tanh %30 : vector<8x128xf32>
    %32 = vector.extract_strided_slice %17 {offsets = [0, 384], sizes = [8, 128], strides = [1, 1]} : vector<8x512xf32> to vector<8x128xf32>
    %33 = arith.negf %32 : vector<8x128xf32>
    %34 = math.exp %33 : vector<8x128xf32>
    %cst_16 = arith.constant 1.000000e+00 : f32
    %35 = vector.broadcast %cst_16 : f32 to vector<8x128xf32>
    %36 = arith.addf %35, %34 : vector<8x128xf32>
    %37 = arith.divf %35, %36 : vector<8x128xf32>
    %38 = arith.mulf %29, %10 : vector<8x128xf32>
    %39 = arith.mulf %23, %31 : vector<8x128xf32>
    %40 = arith.addf %38, %39 : vector<8x128xf32>
    %41 = math.tanh %40 : vector<8x128xf32>
    %42 = arith.mulf %37, %41 : vector<8x128xf32>
    %c1_i32 = arith.constant 1 : i32
    %c8_i32_17 = arith.constant 8 : i32
    %43 = arith.muli %c1_i32, %c8_i32_17 : i32
    %44 = tpu.assume_multiple %43, 8 : i32
    %45 = arith.index_cast %44 : i32 to index
    %c0_18 = arith.constant 0 : index
    %46 = vector.load %arg7[%45, %c0_18] : memref<64x512xf32, #tpu.memory_space<vmem>>, vector<8x512xf32>
    %47 = arith.truncf %42 : vector<8x128xf32> to vector<8x128xbf16>
    %cst_19 = arith.constant dense<0.000000e+00> : vector<8x512xf32>
    %48 = tpu.matmul %47, %8, %cst_19 {dimension_numbers = #tpu.dot_dimension_numbers<[1], [0], [0], [1], [0, 0, 1, 1], [], []>} : vector<8x128xbf16>, vector<128x512xbf16>, vector<8x512xf32> -> vector<8x512xf32>
    %49 = arith.addf %46, %48 : vector<8x512xf32>
    %50 = vector.extract_strided_slice %49 {offsets = [0, 0], sizes = [8, 128], strides = [1, 1]} : vector<8x512xf32> to vector<8x128xf32>
    %51 = arith.negf %50 : vector<8x128xf32>
    %52 = math.exp %51 : vector<8x128xf32>
    %cst_20 = arith.constant 1.000000e+00 : f32
    %53 = vector.broadcast %cst_20 : f32 to vector<8x128xf32>
    %54 = arith.addf %53, %52 : vector<8x128xf32>
    %55 = arith.divf %53, %54 : vector<8x128xf32>
    %56 = vector.extract_strided_slice %49 {offsets = [0, 128], sizes = [8, 128], strides = [1, 1]} : vector<8x512xf32> to vector<8x128xf32>
    %57 = arith.negf %56 : vector<8x128xf32>
    %58 = math.exp %57 : vector<8x128xf32>
    %cst_21 = arith.constant 1.000000e+00 : f32
    %59 = vector.broadcast %cst_21 : f32 to vector<8x128xf32>
    %60 = arith.addf %59, %58 : vector<8x128xf32>
    %61 = arith.divf %59, %60 : vector<8x128xf32>
    %62 = vector.extract_strided_slice %49 {offsets = [0, 256], sizes = [8, 128], strides = [1, 1]} : vector<8x512xf32> to vector<8x128xf32>
    %63 = math.tanh %62 : vector<8x128xf32>
    %64 = vector.extract_strided_slice %49 {offsets = [0, 384], sizes = [8, 128], strides = [1, 1]} : vector<8x512xf32> to vector<8x128xf32>
    %65 = arith.negf %64 : vector<8x128xf32>
    %66 = math.exp %65 : vector<8x128xf32>
    %cst_22 = arith.constant 1.000000e+00 : f32
    %67 = vector.broadcast %cst_22 : f32 to vector<8x128xf32>
    %68 = arith.addf %67, %66 : vector<8x128xf32>
    %69 = arith.divf %67, %68 : vector<8x128xf32>
    %70 = arith.mulf %61, %40 : vector<8x128xf32>
    %71 = arith.mulf %55, %63 : vector<8x128xf32>
    %72 = arith.addf %70, %71 : vector<8x128xf32>
    %73 = math.tanh %72 : vector<8x128xf32>
    %74 = arith.mulf %69, %73 : vector<8x128xf32>
    %c2_i32 = arith.constant 2 : i32
    %c8_i32_23 = arith.constant 8 : i32
    %75 = arith.muli %c2_i32, %c8_i32_23 : i32
    %76 = tpu.assume_multiple %75, 8 : i32
    %77 = arith.index_cast %76 : i32 to index
    %c0_24 = arith.constant 0 : index
    %78 = vector.load %arg7[%77, %c0_24] : memref<64x512xf32, #tpu.memory_space<vmem>>, vector<8x512xf32>
    %79 = arith.truncf %74 : vector<8x128xf32> to vector<8x128xbf16>
    %cst_25 = arith.constant dense<0.000000e+00> : vector<8x512xf32>
    %80 = tpu.matmul %79, %8, %cst_25 {dimension_numbers = #tpu.dot_dimension_numbers<[1], [0], [0], [1], [0, 0, 1, 1], [], []>} : vector<8x128xbf16>, vector<128x512xbf16>, vector<8x512xf32> -> vector<8x512xf32>
    %81 = arith.addf %78, %80 : vector<8x512xf32>
    %82 = vector.extract_strided_slice %81 {offsets = [0, 0], sizes = [8, 128], strides = [1, 1]} : vector<8x512xf32> to vector<8x128xf32>
    %83 = arith.negf %82 : vector<8x128xf32>
    %84 = math.exp %83 : vector<8x128xf32>
    %cst_26 = arith.constant 1.000000e+00 : f32
    %85 = vector.broadcast %cst_26 : f32 to vector<8x128xf32>
    %86 = arith.addf %85, %84 : vector<8x128xf32>
    %87 = arith.divf %85, %86 : vector<8x128xf32>
    %88 = vector.extract_strided_slice %81 {offsets = [0, 128], sizes = [8, 128], strides = [1, 1]} : vector<8x512xf32> to vector<8x128xf32>
    %89 = arith.negf %88 : vector<8x128xf32>
    %90 = math.exp %89 : vector<8x128xf32>
    %cst_27 = arith.constant 1.000000e+00 : f32
    %91 = vector.broadcast %cst_27 : f32 to vector<8x128xf32>
    %92 = arith.addf %91, %90 : vector<8x128xf32>
    %93 = arith.divf %91, %92 : vector<8x128xf32>
    %94 = vector.extract_strided_slice %81 {offsets = [0, 256], sizes = [8, 128], strides = [1, 1]} : vector<8x512xf32> to vector<8x128xf32>
    %95 = math.tanh %94 : vector<8x128xf32>
    %96 = vector.extract_strided_slice %81 {offsets = [0, 384], sizes = [8, 128], strides = [1, 1]} : vector<8x512xf32> to vector<8x128xf32>
    %97 = arith.negf %96 : vector<8x128xf32>
    %98 = math.exp %97 : vector<8x128xf32>
    %cst_28 = arith.constant 1.000000e+00 : f32
    %99 = vector.broadcast %cst_28 : f32 to vector<8x128xf32>
    %100 = arith.addf %99, %98 : vector<8x128xf32>
    %101 = arith.divf %99, %100 : vector<8x128xf32>
    %102 = arith.mulf %93, %72 : vector<8x128xf32>
    %103 = arith.mulf %87, %95 : vector<8x128xf32>
    %104 = arith.addf %102, %103 : vector<8x128xf32>
    %105 = math.tanh %104 : vector<8x128xf32>
    %106 = arith.mulf %101, %105 : vector<8x128xf32>
    %c3_i32 = arith.constant 3 : i32
    %c8_i32_29 = arith.constant 8 : i32
    %107 = arith.muli %c3_i32, %c8_i32_29 : i32
    %108 = tpu.assume_multiple %107, 8 : i32
    %109 = arith.index_cast %108 : i32 to index
    %c0_30 = arith.constant 0 : index
    %110 = vector.load %arg7[%109, %c0_30] : memref<64x512xf32, #tpu.memory_space<vmem>>, vector<8x512xf32>
    %111 = arith.truncf %106 : vector<8x128xf32> to vector<8x128xbf16>
    %cst_31 = arith.constant dense<0.000000e+00> : vector<8x512xf32>
    %112 = tpu.matmul %111, %8, %cst_31 {dimension_numbers = #tpu.dot_dimension_numbers<[1], [0], [0], [1], [0, 0, 1, 1], [], []>} : vector<8x128xbf16>, vector<128x512xbf16>, vector<8x512xf32> -> vector<8x512xf32>
    %113 = arith.addf %110, %112 : vector<8x512xf32>
    %114 = vector.extract_strided_slice %113 {offsets = [0, 0], sizes = [8, 128], strides = [1, 1]} : vector<8x512xf32> to vector<8x128xf32>
    %115 = arith.negf %114 : vector<8x128xf32>
    %116 = math.exp %115 : vector<8x128xf32>
    %cst_32 = arith.constant 1.000000e+00 : f32
    %117 = vector.broadcast %cst_32 : f32 to vector<8x128xf32>
    %118 = arith.addf %117, %116 : vector<8x128xf32>
    %119 = arith.divf %117, %118 : vector<8x128xf32>
    %120 = vector.extract_strided_slice %113 {offsets = [0, 128], sizes = [8, 128], strides = [1, 1]} : vector<8x512xf32> to vector<8x128xf32>
    %121 = arith.negf %120 : vector<8x128xf32>
    %122 = math.exp %121 : vector<8x128xf32>
    %cst_33 = arith.constant 1.000000e+00 : f32
    %123 = vector.broadcast %cst_33 : f32 to vector<8x128xf32>
    %124 = arith.addf %123, %122 : vector<8x128xf32>
    %125 = arith.divf %123, %124 : vector<8x128xf32>
    %126 = vector.extract_strided_slice %113 {offsets = [0, 256], sizes = [8, 128], strides = [1, 1]} : vector<8x512xf32> to vector<8x128xf32>
    %127 = math.tanh %126 : vector<8x128xf32>
    %128 = vector.extract_strided_slice %113 {offsets = [0, 384], sizes = [8, 128], strides = [1, 1]} : vector<8x512xf32> to vector<8x128xf32>
    %129 = arith.negf %128 : vector<8x128xf32>
    %130 = math.exp %129 : vector<8x128xf32>
    %cst_34 = arith.constant 1.000000e+00 : f32
    %131 = vector.broadcast %cst_34 : f32 to vector<8x128xf32>
    %132 = arith.addf %131, %130 : vector<8x128xf32>
    %133 = arith.divf %131, %132 : vector<8x128xf32>
    %134 = arith.mulf %125, %104 : vector<8x128xf32>
    %135 = arith.mulf %119, %127 : vector<8x128xf32>
    %136 = arith.addf %134, %135 : vector<8x128xf32>
    %137 = math.tanh %136 : vector<8x128xf32>
    %138 = arith.mulf %133, %137 : vector<8x128xf32>
    %c4_i32 = arith.constant 4 : i32
    %c8_i32_35 = arith.constant 8 : i32
    %139 = arith.muli %c4_i32, %c8_i32_35 : i32
    %140 = tpu.assume_multiple %139, 8 : i32
    %141 = arith.index_cast %140 : i32 to index
    %c0_36 = arith.constant 0 : index
    %142 = vector.load %arg7[%141, %c0_36] : memref<64x512xf32, #tpu.memory_space<vmem>>, vector<8x512xf32>
    %143 = arith.truncf %138 : vector<8x128xf32> to vector<8x128xbf16>
    %cst_37 = arith.constant dense<0.000000e+00> : vector<8x512xf32>
    %144 = tpu.matmul %143, %8, %cst_37 {dimension_numbers = #tpu.dot_dimension_numbers<[1], [0], [0], [1], [0, 0, 1, 1], [], []>} : vector<8x128xbf16>, vector<128x512xbf16>, vector<8x512xf32> -> vector<8x512xf32>
    %145 = arith.addf %142, %144 : vector<8x512xf32>
    %146 = vector.extract_strided_slice %145 {offsets = [0, 0], sizes = [8, 128], strides = [1, 1]} : vector<8x512xf32> to vector<8x128xf32>
    %147 = arith.negf %146 : vector<8x128xf32>
    %148 = math.exp %147 : vector<8x128xf32>
    %cst_38 = arith.constant 1.000000e+00 : f32
    %149 = vector.broadcast %cst_38 : f32 to vector<8x128xf32>
    %150 = arith.addf %149, %148 : vector<8x128xf32>
    %151 = arith.divf %149, %150 : vector<8x128xf32>
    %152 = vector.extract_strided_slice %145 {offsets = [0, 128], sizes = [8, 128], strides = [1, 1]} : vector<8x512xf32> to vector<8x128xf32>
    %153 = arith.negf %152 : vector<8x128xf32>
    %154 = math.exp %153 : vector<8x128xf32>
    %cst_39 = arith.constant 1.000000e+00 : f32
    %155 = vector.broadcast %cst_39 : f32 to vector<8x128xf32>
    %156 = arith.addf %155, %154 : vector<8x128xf32>
    %157 = arith.divf %155, %156 : vector<8x128xf32>
    %158 = vector.extract_strided_slice %145 {offsets = [0, 256], sizes = [8, 128], strides = [1, 1]} : vector<8x512xf32> to vector<8x128xf32>
    %159 = math.tanh %158 : vector<8x128xf32>
    %160 = vector.extract_strided_slice %145 {offsets = [0, 384], sizes = [8, 128], strides = [1, 1]} : vector<8x512xf32> to vector<8x128xf32>
    %161 = arith.negf %160 : vector<8x128xf32>
    %162 = math.exp %161 : vector<8x128xf32>
    %cst_40 = arith.constant 1.000000e+00 : f32
    %163 = vector.broadcast %cst_40 : f32 to vector<8x128xf32>
    %164 = arith.addf %163, %162 : vector<8x128xf32>
    %165 = arith.divf %163, %164 : vector<8x128xf32>
    %166 = arith.mulf %157, %136 : vector<8x128xf32>
    %167 = arith.mulf %151, %159 : vector<8x128xf32>
    %168 = arith.addf %166, %167 : vector<8x128xf32>
    %169 = math.tanh %168 : vector<8x128xf32>
    %170 = arith.mulf %165, %169 : vector<8x128xf32>
    %c5_i32 = arith.constant 5 : i32
    %c8_i32_41 = arith.constant 8 : i32
    %171 = arith.muli %c5_i32, %c8_i32_41 : i32
    %172 = tpu.assume_multiple %171, 8 : i32
    %173 = arith.index_cast %172 : i32 to index
    %c0_42 = arith.constant 0 : index
    %174 = vector.load %arg7[%173, %c0_42] : memref<64x512xf32, #tpu.memory_space<vmem>>, vector<8x512xf32>
    %175 = arith.truncf %170 : vector<8x128xf32> to vector<8x128xbf16>
    %cst_43 = arith.constant dense<0.000000e+00> : vector<8x512xf32>
    %176 = tpu.matmul %175, %8, %cst_43 {dimension_numbers = #tpu.dot_dimension_numbers<[1], [0], [0], [1], [0, 0, 1, 1], [], []>} : vector<8x128xbf16>, vector<128x512xbf16>, vector<8x512xf32> -> vector<8x512xf32>
    %177 = arith.addf %174, %176 : vector<8x512xf32>
    %178 = vector.extract_strided_slice %177 {offsets = [0, 0], sizes = [8, 128], strides = [1, 1]} : vector<8x512xf32> to vector<8x128xf32>
    %179 = arith.negf %178 : vector<8x128xf32>
    %180 = math.exp %179 : vector<8x128xf32>
    %cst_44 = arith.constant 1.000000e+00 : f32
    %181 = vector.broadcast %cst_44 : f32 to vector<8x128xf32>
    %182 = arith.addf %181, %180 : vector<8x128xf32>
    %183 = arith.divf %181, %182 : vector<8x128xf32>
    %184 = vector.extract_strided_slice %177 {offsets = [0, 128], sizes = [8, 128], strides = [1, 1]} : vector<8x512xf32> to vector<8x128xf32>
    %185 = arith.negf %184 : vector<8x128xf32>
    %186 = math.exp %185 : vector<8x128xf32>
    %cst_45 = arith.constant 1.000000e+00 : f32
    %187 = vector.broadcast %cst_45 : f32 to vector<8x128xf32>
    %188 = arith.addf %187, %186 : vector<8x128xf32>
    %189 = arith.divf %187, %188 : vector<8x128xf32>
    %190 = vector.extract_strided_slice %177 {offsets = [0, 256], sizes = [8, 128], strides = [1, 1]} : vector<8x512xf32> to vector<8x128xf32>
    %191 = math.tanh %190 : vector<8x128xf32>
    %192 = vector.extract_strided_slice %177 {offsets = [0, 384], sizes = [8, 128], strides = [1, 1]} : vector<8x512xf32> to vector<8x128xf32>
    %193 = arith.negf %192 : vector<8x128xf32>
    %194 = math.exp %193 : vector<8x128xf32>
    %cst_46 = arith.constant 1.000000e+00 : f32
    %195 = vector.broadcast %cst_46 : f32 to vector<8x128xf32>
    %196 = arith.addf %195, %194 : vector<8x128xf32>
    %197 = arith.divf %195, %196 : vector<8x128xf32>
    %198 = arith.mulf %189, %168 : vector<8x128xf32>
    %199 = arith.mulf %183, %191 : vector<8x128xf32>
    %200 = arith.addf %198, %199 : vector<8x128xf32>
    %201 = math.tanh %200 : vector<8x128xf32>
    %202 = arith.mulf %197, %201 : vector<8x128xf32>
    %c6_i32 = arith.constant 6 : i32
    %c8_i32_47 = arith.constant 8 : i32
    %203 = arith.muli %c6_i32, %c8_i32_47 : i32
    %204 = tpu.assume_multiple %203, 8 : i32
    %205 = arith.index_cast %204 : i32 to index
    %c0_48 = arith.constant 0 : index
    %206 = vector.load %arg7[%205, %c0_48] : memref<64x512xf32, #tpu.memory_space<vmem>>, vector<8x512xf32>
    %207 = arith.truncf %202 : vector<8x128xf32> to vector<8x128xbf16>
    %cst_49 = arith.constant dense<0.000000e+00> : vector<8x512xf32>
    %208 = tpu.matmul %207, %8, %cst_49 {dimension_numbers = #tpu.dot_dimension_numbers<[1], [0], [0], [1], [0, 0, 1, 1], [], []>} : vector<8x128xbf16>, vector<128x512xbf16>, vector<8x512xf32> -> vector<8x512xf32>
    %209 = arith.addf %206, %208 : vector<8x512xf32>
    %210 = vector.extract_strided_slice %209 {offsets = [0, 0], sizes = [8, 128], strides = [1, 1]} : vector<8x512xf32> to vector<8x128xf32>
    %211 = arith.negf %210 : vector<8x128xf32>
    %212 = math.exp %211 : vector<8x128xf32>
    %cst_50 = arith.constant 1.000000e+00 : f32
    %213 = vector.broadcast %cst_50 : f32 to vector<8x128xf32>
    %214 = arith.addf %213, %212 : vector<8x128xf32>
    %215 = arith.divf %213, %214 : vector<8x128xf32>
    %216 = vector.extract_strided_slice %209 {offsets = [0, 128], sizes = [8, 128], strides = [1, 1]} : vector<8x512xf32> to vector<8x128xf32>
    %217 = arith.negf %216 : vector<8x128xf32>
    %218 = math.exp %217 : vector<8x128xf32>
    %cst_51 = arith.constant 1.000000e+00 : f32
    %219 = vector.broadcast %cst_51 : f32 to vector<8x128xf32>
    %220 = arith.addf %219, %218 : vector<8x128xf32>
    %221 = arith.divf %219, %220 : vector<8x128xf32>
    %222 = vector.extract_strided_slice %209 {offsets = [0, 256], sizes = [8, 128], strides = [1, 1]} : vector<8x512xf32> to vector<8x128xf32>
    %223 = math.tanh %222 : vector<8x128xf32>
    %224 = vector.extract_strided_slice %209 {offsets = [0, 384], sizes = [8, 128], strides = [1, 1]} : vector<8x512xf32> to vector<8x128xf32>
    %225 = arith.negf %224 : vector<8x128xf32>
    %226 = math.exp %225 : vector<8x128xf32>
    %cst_52 = arith.constant 1.000000e+00 : f32
    %227 = vector.broadcast %cst_52 : f32 to vector<8x128xf32>
    %228 = arith.addf %227, %226 : vector<8x128xf32>
    %229 = arith.divf %227, %228 : vector<8x128xf32>
    %230 = arith.mulf %221, %200 : vector<8x128xf32>
    %231 = arith.mulf %215, %223 : vector<8x128xf32>
    %232 = arith.addf %230, %231 : vector<8x128xf32>
    %233 = math.tanh %232 : vector<8x128xf32>
    %234 = arith.mulf %229, %233 : vector<8x128xf32>
    %c7_i32 = arith.constant 7 : i32
    %c8_i32_53 = arith.constant 8 : i32
    %235 = arith.muli %c7_i32, %c8_i32_53 : i32
    %236 = tpu.assume_multiple %235, 8 : i32
    %237 = arith.index_cast %236 : i32 to index
    %c0_54 = arith.constant 0 : index
    %238 = vector.load %arg7[%237, %c0_54] : memref<64x512xf32, #tpu.memory_space<vmem>>, vector<8x512xf32>
    %239 = arith.truncf %234 : vector<8x128xf32> to vector<8x128xbf16>
    %cst_55 = arith.constant dense<0.000000e+00> : vector<8x512xf32>
    %240 = tpu.matmul %239, %8, %cst_55 {dimension_numbers = #tpu.dot_dimension_numbers<[1], [0], [0], [1], [0, 0, 1, 1], [], []>} : vector<8x128xbf16>, vector<128x512xbf16>, vector<8x512xf32> -> vector<8x512xf32>
    %241 = arith.addf %238, %240 : vector<8x512xf32>
    %242 = vector.extract_strided_slice %241 {offsets = [0, 0], sizes = [8, 128], strides = [1, 1]} : vector<8x512xf32> to vector<8x128xf32>
    %243 = arith.negf %242 : vector<8x128xf32>
    %244 = math.exp %243 : vector<8x128xf32>
    %cst_56 = arith.constant 1.000000e+00 : f32
    %245 = vector.broadcast %cst_56 : f32 to vector<8x128xf32>
    %246 = arith.addf %245, %244 : vector<8x128xf32>
    %247 = arith.divf %245, %246 : vector<8x128xf32>
    %248 = vector.extract_strided_slice %241 {offsets = [0, 128], sizes = [8, 128], strides = [1, 1]} : vector<8x512xf32> to vector<8x128xf32>
    %249 = arith.negf %248 : vector<8x128xf32>
    %250 = math.exp %249 : vector<8x128xf32>
    %cst_57 = arith.constant 1.000000e+00 : f32
    %251 = vector.broadcast %cst_57 : f32 to vector<8x128xf32>
    %252 = arith.addf %251, %250 : vector<8x128xf32>
    %253 = arith.divf %251, %252 : vector<8x128xf32>
    %254 = vector.extract_strided_slice %241 {offsets = [0, 256], sizes = [8, 128], strides = [1, 1]} : vector<8x512xf32> to vector<8x128xf32>
    %255 = math.tanh %254 : vector<8x128xf32>
    %256 = vector.extract_strided_slice %241 {offsets = [0, 384], sizes = [8, 128], strides = [1, 1]} : vector<8x512xf32> to vector<8x128xf32>
    %257 = arith.negf %256 : vector<8x128xf32>
    %258 = math.exp %257 : vector<8x128xf32>
    %cst_58 = arith.constant 1.000000e+00 : f32
    %259 = vector.broadcast %cst_58 : f32 to vector<8x128xf32>
    %260 = arith.addf %259, %258 : vector<8x128xf32>
    %261 = arith.divf %259, %260 : vector<8x128xf32>
    %262 = arith.mulf %253, %232 : vector<8x128xf32>
    %263 = arith.mulf %247, %255 : vector<8x128xf32>
    %264 = arith.addf %262, %263 : vector<8x128xf32>
    %265 = math.tanh %264 : vector<8x128xf32>
    %266 = arith.mulf %261, %265 : vector<8x128xf32>
    %c8_i32_59 = arith.constant 8 : i32
    %c0_60 = arith.constant 0 : index
    %c0_61 = arith.constant 0 : index
    %267 = vector.load %arg4[%c0_60, %c0_61] : memref<128x128xf32, #tpu.memory_space<vmem>>, vector<128x128xf32>
    %cst_62 = arith.constant dense<0.000000e+00> : vector<8x128xf32>
    %268 = tpu.matmul %266, %267, %cst_62 {dimension_numbers = #tpu.dot_dimension_numbers<[1], [0], [0], [1], [0, 0, 1, 1], [], []>} : vector<8x128xf32>, vector<128x128xf32>, vector<8x128xf32> -> vector<8x128xf32>
    %c0_63 = arith.constant 0 : index
    %c0_64 = arith.constant 0 : index
    %269 = vector.load %arg5[%c0_63, %c0_64] : memref<1x128xf32, #tpu.memory_space<vmem>>, vector<1x128xf32>
    %270 = vector.broadcast %269 : vector<1x128xf32> to vector<8x128xf32>
    %271 = arith.addf %268, %270 : vector<8x128xf32>
    %c0_65 = arith.constant 0 : index
    %c0_66 = arith.constant 0 : index
    %272 = vector.load %arg6[%c0_65, %c0_66] : memref<8x128xf32, #tpu.memory_space<vmem>>, vector<8x128xf32>
    tpu.vector_store %arg6[%c0_65, %c0_66], %271 {strides = array<i32>} : memref<8x128xf32, #tpu.memory_space<vmem>>, vector<8x128xf32>,
    return
  }
}

</mosaic_0001>

<llo_original>
// kernel: tpu_custom_call.1
$region0: #{tpu_custom_call.1}
  #allocation0 [shape = 'u32[]', space=smem, size = 0x4, offset = 0x4, fixed_abs, tag = 'smem constant byte address 0x4 - core index']
  #allocation1 [shape = 'u32[144,128]{1,0:T(1,128)}', space=vmem, size = 0x12000, scoped, tag = 'internal scratch']
  #allocation2 [shape = 'f32[64,512]{1,0:T(8,128)}', space=vmem, size = 0x20000, scoped, tag = 'scratch operand']
  %s0 = inlined_call_operand.hbm [shape: bf16[8,8,128], index: 0, kind: input, shape index: {}]
  %s1 = inlined_call_operand.hbm [shape: bf16[128,512], index: 1, kind: input, shape index: {}]
  %s2 = inlined_call_operand.hbm [shape: bf16[128,512], index: 2, kind: input, shape index: {}]
  %s3 = inlined_call_operand.vmem [shape: f32[1,512], index: 3, kind: input, shape index: {}]
  %s4 = inlined_call_operand.hbm [shape: f32[128,128], index: 4, kind: input, shape index: {}]
  %s5 = inlined_call_operand.vmem [shape: f32[1,128], index: 5, kind: input, shape index: {}]
  %s6 = inlined_call_operand.hbm [shape: f32[8,128], index: 6, kind: output, shape index: {}]
  %s7 = sld [smem:[#allocation0]]
  $region50: #{tpu_custom_call.1} parent=0
    _
  %s9 = ssub.s32 1, %s7
  %s10 = scalar_select 0, %s9, %s7
  $region1: #{tpu_custom_call.1} parent=0
    #allocation3 [shape = 'u8[16384]{0}', space=vmem, size = 0x4000, scoped, tag = 'input window, operand 0, single buffered']
    #allocation4 [shape = 's32[1]{0}', space=sflag, size = 0x4, scoped, tag = 'scoped memory for tpu_custom_call.1']
    #allocation5 [shape = 's32[1]{0}', space=sflag, size = 0x4, scoped, tag = 'scoped memory for tpu_custom_call.1']
    #allocation6 [shape = 'u8[131072]{0}', space=vmem, size = 0x20000, scoped, tag = 'input window, operand 1, single buffered']
    #allocation7 [shape = 's32[1]{0}', space=sflag, size = 0x4, scoped, tag = 'scoped memory for tpu_custom_call.1']
    #allocation8 [shape = 'u8[131072]{0}', space=vmem, size = 0x20000, scoped, tag = 'input window, operand 2, single buffered']
    #allocation9 [shape = 'u8[65536]{0}', space=vmem, size = 0x10000, scoped, tag = 'input window, operand 4, single buffered']
    #allocation10 [shape = 's32[1]{0}', space=sflag, size = 0x4, scoped, tag = 'scoped memory for tpu_custom_call.1']
    #allocation11 [shape = 'u8[4096]{0}', space=vmem, size = 0x1000, scoped, tag = 'output window, operand 0, single buffered']
    %11 = vsyncpa [#allocation4], 0
    %12 = vsyncpa [#allocation7], 0
    %13 = vsyncpa [#allocation10], 0
    %14 = vsyncpa [#allocation5], 0
    // Predicated region
    $region2: #{tpu_custom_call.1} parent=1 // pred_check
      _
    $region3: #{tpu_custom_call.1} parent=1 // pred_check_branch
      %16 = sbr.rel (0) target = $region5
    $region4: #{tpu_custom_call.1} parent=1 // pred_region
      %s18 = ssub.s32 512, 512
      %19 = vsyncadd [#allocation4], %s18
      %s20 = sshll.u32 [#allocation3], 4
      %s21 = int_to_ptr.vmem [resolvable:$true] %s20
      %26 = dma.hbm_to_vmem [thread:$0]  %s0, 512, %s21, [#allocation4], 64, 64, 4
    $region5: #{tpu_custom_call.1} parent=1 // pred_fallthru
      _
    // Predicated region
    $region6: #{tpu_custom_call.1} parent=1 // pred_check
      _
    $region7: #{tpu_custom_call.1} parent=1 // pred_check_branch
      %28 = sbr.rel (0) target = $region9
    $region8: #{tpu_custom_call.1} parent=1 // pred_region
      %s30 = ssub.s32 4096, 4096
      %31 = vsyncadd [#allocation7], %s30
      %s32 = sshll.u32 [#allocation6], 4
      %s33 = int_to_ptr.vmem [resolvable:$true] %s32
      %38 = dma.hbm_to_vmem [thread:$0]  %s1, 4096, %s33, [#allocation7], 256, 256, 16
    $region9: #{tpu_custom_call.1} parent=1 // pred_fallthru
      _
    // Predicated region
    $region10: #{tpu_custom_call.1} parent=1 // pred_check
      _
    $region11: #{tpu_custom_call.1} parent=1 // pred_check_branch
      %40 = sbr.rel (0) target = $region13
    $region12: #{tpu_custom_call.1} parent=1 // pred_region
      %s42 = ssub.s32 4096, 4096
      %43 = vsyncadd [#allocation7], %s42
      %s44 = sshll.u32 [#allocation8], 4
      %s45 = int_to_ptr.vmem [resolvable:$true] %s44
      %50 = dma.hbm_to_vmem [thread:$0]  %s2, 4096, %s45, [#allocation7], 256, 256, 16
    $region13: #{tpu_custom_call.1} parent=1 // pred_fallthru
      _
    // Predicated region
    $region14: #{tpu_custom_call.1} parent=1 // pred_check
      _
    $region15: #{tpu_custom_call.1} parent=1 // pred_check_branch
      %52 = sbr.rel (0) target = $region17
    $region16: #{tpu_custom_call.1} parent=1 // pred_region
      _
    $region17: #{tpu_custom_call.1} parent=1 // pred_fallthru
      _
    // Predicated region
    $region18: #{tpu_custom_call.1} parent=1 // pred_check
      _
    $region19: #{tpu_custom_call.1} parent=1 // pred_check_branch
      %54 = sbr.rel (0) target = $region21
    $region20: #{tpu_custom_call.1} parent=1 // pred_region
      %s56 = ssub.s32 2048, 2048
      %57 = vsyncadd [#allocation10], %s56
      %s58 = sshll.u32 [#allocation9], 4
      %s59 = int_to_ptr.vmem [resolvable:$true] %s58
      %64 = dma.hbm_to_vmem [thread:$0]  %s4, 2048, %s59, [#allocation10], 128, 128, 8
    $region21: #{tpu_custom_call.1} parent=1 // pred_fallthru
      _
    // Predicated region
    $region22: #{tpu_custom_call.1} parent=1 // pred_check
      _
    $region23: #{tpu_custom_call.1} parent=1 // pred_check_branch
      %66 = sbr.rel (0) target = $region25
    $region24: #{tpu_custom_call.1} parent=1 // pred_region
      _
    $region25: #{tpu_custom_call.1} parent=1 // pred_fallthru
      _
    // Predicated region
    $region26: #{tpu_custom_call.1} parent=1 // pred_check
      _
    $region27: #{tpu_custom_call.1} parent=1 // pred_check_branch
      %68 = sbr.rel (0) target = $region29
    $region28: #{tpu_custom_call.1} parent=1 // pred_region
      %69 = dma.done [#allocation4], 512
    $region29: #{tpu_custom_call.1} parent=1 // pred_fallthru
      _
    // Predicated region
    $region30: #{tpu_custom_call.1} parent=1 // pred_check
      _
    $region31: #{tpu_custom_call.1} parent=1 // pred_check_branch
      %71 = sbr.rel (0) target = $region33
    $region32: #{tpu_custom_call.1} parent=1 // pred_region
      %72 = dma.done [#allocation7], 4096
    $region33: #{tpu_custom_call.1} parent=1 // pred_fallthru
      _
    // Predicated region
    $region34: #{tpu_custom_call.1} parent=1 // pred_check
      _
    $region35: #{tpu_custom_call.1} parent=1 // pred_check_branch
      %74 = sbr.rel (0) target = $region37
    $region36: #{tpu_custom_call.1} parent=1 // pred_region
      %75 = dma.done [#allocation7], 4096
    $region37: #{tpu_custom_call.1} parent=1 // pred_fallthru
      _
    // Predicated region
    $region38: #{tpu_custom_call.1} parent=1 // pred_check
      _
    $region39: #{tpu_custom_call.1} parent=1 // pred_check_branch
      %77 = sbr.rel (0) target = $region41
    $region40: #{tpu_custom_call.1} parent=1 // pred_region
      %78 = dma.done [#allocation10], 2048
    $region41: #{tpu_custom_call.1} parent=1 // pred_fallthru
      _
    %v80 = vld [vmem:[#allocation3] sm:$0xf]
    %v81 = vld [vmem:[#allocation3 + $0x4] sm:$0xf]
    %v82 = vld [vmem:[#allocation3 + $0x8] sm:$0xf]
    %v83 = vld [vmem:[#allocation3 + $0xc] sm:$0xf]
    %v84 = vld [vmem:[#allocation3 + $0x10] sm:$0xf]
    %v85 = vld [vmem:[#allocation3 + $0x14] sm:$0xf]
    %v86 = vld [vmem:[#allocation3 + $0x18] sm:$0xf]
    %v87 = vld [vmem:[#allocation3 + $0x1c] sm:$0xf]
    %v88 = vld [vmem:[#allocation6] sm:$0xff]
    %v89 = vld [vmem:[#allocation6 + $0x8] sm:$0xff]
    %v90 = vld [vmem:[#allocation6 + $0x10] sm:$0xff]
    %v91 = vld [vmem:[#allocation6 + $0x18] sm:$0xff]
    %v92 = vld [vmem:[#allocation6 + $0x20] sm:$0xff]
    %v93 = vld [vmem:[#allocation6 + $0x28] sm:$0xff]
    %v94 = vld [vmem:[#allocation6 + $0x30] sm:$0xff]
    %v95 = vld [vmem:[#allocation6 + $0x38] sm:$0xff]
    %v96 = vld [vmem:[#allocation6 + $0x40] sm:$0xff]
    %v97 = vld [vmem:[#allocation6 + $0x48] sm:$0xff]
    %v98 = vld [vmem:[#allocation6 + $0x50] sm:$0xff]
    %v99 = vld [vmem:[#allocation6 + $0x58] sm:$0xff]
    %v100 = vld [vmem:[#allocation6 + $0x60] sm:$0xff]
    %v101 = vld [vmem:[#allocation6 + $0x68] sm:$0xff]
    %v102 = vld [vmem:[#allocation6 + $0x70] sm:$0xff]
    %v103 = vld [vmem:[#allocation6 + $0x78] sm:$0xff]
    %v104 = vld [vmem:[#allocation6 + $0x80] sm:$0xff]
    %v105 = vld [vmem:[#allocation6 + $0x88] sm:$0xff]
    %v106 = vld [vmem:[#allocation6 + $0x90] sm:$0xff]
    %v107 = vld [vmem:[#allocation6 + $0x98] sm:$0xff]
    %v108 = vld [vmem:[#allocation6 + $0xa0] sm:$0xff]
    %v109 = vld [vmem:[#allocation6 + $0xa8] sm:$0xff]
    %v110 = vld [vmem:[#allocation6 + $0xb0] sm:$0xff]
    %v111 = vld [vmem:[#allocation6 + $0xb8] sm:$0xff]
    %v112 = vld [vmem:[#allocation6 + $0xc0] sm:$0xff]
    %v113 = vld [vmem:[#allocation6 + $0xc8] sm:$0xff]
    %v114 = vld [vmem:[#allocation6 + $0xd0] sm:$0xff]
    %v115 = vld [vmem:[#allocation6 + $0xd8] sm:$0xff]
    %v116 = vld [vmem:[#allocation6 + $0xe0] sm:$0xff]
    %v117 = vld [vmem:[#allocation6 + $0xe8] sm:$0xff]
    %v118 = vld [vmem:[#allocation6 + $0xf0] sm:$0xff]
    %v119 = vld [vmem:[#allocation6 + $0xf8] sm:$0xff]
    %v120 = vld [vmem:[%s3] sm:$0xf]
    %v122 = vlaneseq
    %v123 = vshrl.u32 %v122, 7
    %v124 = vsub.s32 0, %v123
    %v125 = vrot.slane %v120, %v124
    %v126 = vlaneseq
    %v127 = vshrl.u32 %v126, 7
    %v128 = vsub.s32 1, %v127
    %v129 = vrot.slane %v120, %v128
    %v130 = vlaneseq
    %v131 = vshrl.u32 %v130, 7
    %v132 = vsub.s32 2, %v131
    %v133 = vrot.slane %v120, %v132
    %v134 = vlaneseq
    %v135 = vshrl.u32 %v134, 7
    %v136 = vsub.s32 3, %v135
    %v137 = vrot.slane %v120, %v136
    %v150 = vunpack.c.l.b16 %v80
    %v151 = vunpack.c.l.b16 %v81
    %v152 = vunpack.c.l.b16 %v82
    %v153 = vunpack.c.l.b16 %v83
    %v154 = vunpack.c.l.b16 %v84
    %v155 = vunpack.c.l.b16 %v85
    %v156 = vunpack.c.l.b16 %v86
    %v157 = vunpack.c.l.b16 %v87
    %v158 = vpack.c.b16 %v151, %v150
    %v159 = vpack.c.b16 %v153, %v152
    %v160 = vpack.c.b16 %v155, %v154
    %v161 = vpack.c.b16 %v157, %v156
    %v198 = vunpack.c.l.b16 %v88
    %v199 = vunpack.c.h.b16 %v88
    %v200 = vunpack.c.l.b16 %v89
    %v201 = vunpack.c.h.b16 %v89
    %v202 = vunpack.c.l.b16 %v90
    %v203 = vunpack.c.h.b16 %v90
    %v204 = vunpack.c.l.b16 %v91
    %v205 = vunpack.c.h.b16 %v91
    %v206 = vunpack.c.l.b16 %v92
    %v207 = vunpack.c.h.b16 %v92
    %v208 = vunpack.c.l.b16 %v93
    %v209 = vunpack.c.h.b16 %v93
    %v210 = vunpack.c.l.b16 %v94
    %v211 = vunpack.c.h.b16 %v94
    %v212 = vunpack.c.l.b16 %v95
    %v213 = vunpack.c.h.b16 %v95
    %v214 = vunpack.c.l.b16 %v96
    %v215 = vunpack.c.h.b16 %v96
    %v216 = vunpack.c.l.b16 %v97
    %v217 = vunpack.c.h.b16 %v97
    %v218 = vunpack.c.l.b16 %v98
    %v219 = vunpack.c.h.b16 %v98
    %v220 = vunpack.c.l.b16 %v99
    %v221 = vunpack.c.h.b16 %v99
    %v222 = vunpack.c.l.b16 %v100
    %v223 = vunpack.c.h.b16 %v100
    %v224 = vunpack.c.l.b16 %v101
    %v225 = vunpack.c.h.b16 %v101
    %v226 = vunpack.c.l.b16 %v102
    %v227 = vunpack.c.h.b16 %v102
    %v228 = vunpack.c.l.b16 %v103
    %v229 = vunpack.c.h.b16 %v103
    %v230 = vunpack.c.l.b16 %v104
    %v231 = vunpack.c.h.b16 %v104
    %v232 = vunpack.c.l.b16 %v105
    %v233 = vunpack.c.h.b16 %v105
    %v234 = vunpack.c.l.b16 %v106
    %v235 = vunpack.c.h.b16 %v106
    %v236 = vunpack.c.l.b16 %v107
    %v237 = vunpack.c.h.b16 %v107
    %v238 = vunpack.c.l.b16 %v108
    %v239 = vunpack.c.h.b16 %v108
    %v240 = vunpack.c.l.b16 %v109
    %v241 = vunpack.c.h.b16 %v109
    %v242 = vunpack.c.l.b16 %v110
    %v243 = vunpack.c.h.b16 %v110
    %v244 = vunpack.c.l.b16 %v111
    %v245 = vunpack.c.h.b16 %v111
    %v246 = vunpack.c.l.b16 %v112
    %v247 = vunpack.c.h.b16 %v112
    %v248 = vunpack.c.l.b16 %v113
    %v249 = vunpack.c.h.b16 %v113
    %v250 = vunpack.c.l.b16 %v114
    %v251 = vunpack.c.h.b16 %v114
    %v252 = vunpack.c.l.b16 %v115
    %v253 = vunpack.c.h.b16 %v115
    %v254 = vunpack.c.l.b16 %v116
    %v255 = vunpack.c.h.b16 %v116
    %v256 = vunpack.c.l.b16 %v117
    %v257 = vunpack.c.h.b16 %v117
    %v258 = vunpack.c.l.b16 %v118
    %v259 = vunpack.c.h.b16 %v118
    %v260 = vunpack.c.l.b16 %v119
    %v261 = vunpack.c.h.b16 %v119
    %v262 = vpack.c.b16 %v202, %v198
    %v263 = vpack.c.b16 %v203, %v199
    %v264 = vpack.c.b16 %v204, %v200
    %v265 = vpack.c.b16 %v205, %v201
    %v266 = vpack.c.b16 %v210, %v206
    %v267 = vpack.c.b16 %v211, %v207
    %v268 = vpack.c.b16 %v212, %v208
    %v269 = vpack.c.b16 %v213, %v209
    %v270 = vpack.c.b16 %v218, %v214
    %v271 = vpack.c.b16 %v219, %v215
    %v272 = vpack.c.b16 %v220, %v216
    %v273 = vpack.c.b16 %v221, %v217
    %v274 = vpack.c.b16 %v226, %v222
    %v275 = vpack.c.b16 %v227, %v223
    %v276 = vpack.c.b16 %v228, %v224
    %v277 = vpack.c.b16 %v229, %v225
    %v278 = vpack.c.b16 %v234, %v230
    %v279 = vpack.c.b16 %v235, %v231
    %v280 = vpack.c.b16 %v236, %v232
    %v281 = vpack.c.b16 %v237, %v233
    %v282 = vpack.c.b16 %v242, %v238
    %v283 = vpack.c.b16 %v243, %v239
    %v284 = vpack.c.b16 %v244, %v240
    %v285 = vpack.c.b16 %v245, %v241
    %v286 = vpack.c.b16 %v250, %v246
    %v287 = vpack.c.b16 %v251, %v247
    %v288 = vpack.c.b16 %v252, %v248
    %v289 = vpack.c.b16 %v253, %v249
    %v290 = vpack.c.b16 %v258, %v254
    %v291 = vpack.c.b16 %v259, %v255
    %v292 = vpack.c.b16 %v260, %v256
    %v293 = vpack.c.b16 %v261, %v257
    %326 = vmatprep.subr.bf16.mxu0 %v263
    %327 = vmatpush1.bf16.msra.mxu0 %v262
    %328 = vmatprep.subr.bf16.mxu0 %v267
    %329 = vmatpush1.bf16.msra.mxu0 %v266
    %330 = vmatprep.subr.bf16.mxu0 %v271
    %331 = vmatpush1.bf16.msra.mxu0 %v270
    %332 = vmatprep.subr.bf16.mxu0 %v275
    %333 = vmatpush1.bf16.msra.mxu0 %v274
    %334 = vmatprep.subr.bf16.mxu0 %v279
    %335 = vmatpush1.bf16.msra.mxu0 %v278
    %336 = vmatprep.subr.bf16.mxu0 %v283
    %337 = vmatpush1.bf16.msra.mxu0 %v282
    %338 = vmatprep.subr.bf16.mxu0 %v287
    %339 = vmatpush1.bf16.msra.mxu0 %v286
    %340 = vmatprep.subr.bf16.mxu0 %v291
    %341 = vmatpush1.bf16.msra.mxu0 %v290
    %342 = vmatprep.subr.bf16.mxu0 0
    %343 = vmatpush1.bf16.msra.mxu0 0
    %344 = vmatprep.subr.bf16.mxu0 0
    %345 = vmatpush1.bf16.msra.mxu0 0
    %346 = vmatprep.subr.bf16.mxu0 0
    %347 = vmatpush1.bf16.msra.mxu0 0
    %348 = vmatprep.subr.bf16.mxu0 0
    %349 = vmatpush1.bf16.msra.mxu0 0
    %350 = vmatprep.subr.bf16.mxu0 0
    %351 = vmatpush1.bf16.msra.mxu0 0
    %352 = vmatprep.subr.bf16.mxu0 0
    %353 = vmatpush1.bf16.msra.mxu0 0
    %354 = vmatprep.subr.bf16.mxu0 0
    %355 = vmatpush1.bf16.msra.mxu0 0
    %356 = vmatprep.subr.bf16.mxu0 0
    %357 = vmatpush1.bf16.msra.mxu0 0
    %358 = vmatprep.mubr.bf16.mxu0 0
    %359 = vmatmul.mubr.bf16.gmra.mrb[0].mxu0 %v158
    %v360 = vpop.f32.mrb[0].mxu0
    %v361 = vadd.f32 %v125, %v360
    %v362 = vpop.f32.mrb[0].mxu0
    %v363 = vadd.f32 %v129, %v362
    %v364 = vpop.f32.mrb[0].mxu0
    %v365 = vadd.f32 %v125, %v364
    %v366 = vpop.f32.mrb[0].mxu0
    %v367 = vadd.f32 %v129, %v366
    %368 = vmatprep.mubr.bf16.mxu0 0
    %369 = vmatmul.mubr.bf16.gmra.mrb[0].mxu0 %v159
    %v370 = vpop.f32.mrb[0].mxu0
    %v371 = vadd.f32 %v125, %v370
    %v372 = vpop.f32.mrb[0].mxu0
    %v373 = vadd.f32 %v129, %v372
    %v374 = vpop.f32.mrb[0].mxu0
    %v375 = vadd.f32 %v125, %v374
    %v376 = vpop.f32.mrb[0].mxu0
    %v377 = vadd.f32 %v129, %v376
    %378 = vmatprep.mubr.bf16.mxu0 0
    %379 = vmatmul.mubr.bf16.gmra.mrb[0].mxu0 %v160
    %v380 = vpop.f32.mrb[0].mxu0
    %v381 = vadd.f32 %v125, %v380
    %v382 = vpop.f32.mrb[0].mxu0
    %v383 = vadd.f32 %v129, %v382
    %v384 = vpop.f32.mrb[0].mxu0
    %v385 = vadd.f32 %v125, %v384
    %v386 = vpop.f32.mrb[0].mxu0
    %v387 = vadd.f32 %v129, %v386
    %388 = vmatprep.mubr.bf16.mxu0 0
    %389 = vmatmul.mubr.bf16.gmra.mrb[0].mxu0 %v161
    %v390 = vpop.f32.mrb[0].mxu0
    %v391 = vadd.f32 %v125, %v390
    %v392 = vpop.f32.mrb[0].mxu0
    %v393 = vadd.f32 %v129, %v392
    %v394 = vpop.f32.mrb[0].mxu0
    %v395 = vadd.f32 %v125, %v394
    %v396 = vpop.f32.mrb[0].mxu0
    %v397 = vadd.f32 %v129, %v396
    %398 = vdwg.mxu0
    %399 = vmatprep.subr.bf16.mxu0 %v265
    %400 = vmatpush1.bf16.msra.mxu0 %v264
    %401 = vmatprep.subr.bf16.mxu0 %v269
    %402 = vmatpush1.bf16.msra.mxu0 %v268
    %403 = vmatprep.subr.bf16.mxu0 %v273
    %404 = vmatpush1.bf16.msra.mxu0 %v272
    %405 = vmatprep.subr.bf16.mxu0 %v277
    %406 = vmatpush1.bf16.msra.mxu0 %v276
    %407 = vmatprep.subr.bf16.mxu0 %v281
    %408 = vmatpush1.bf16.msra.mxu0 %v280
    %409 = vmatprep.subr.bf16.mxu0 %v285
    %410 = vmatpush1.bf16.msra.mxu0 %v284
    %411 = vmatprep.subr.bf16.mxu0 %v289
    %412 = vmatpush1.bf16.msra.mxu0 %v288
    %413 = vmatprep.subr.bf16.mxu0 %v293
    %414 = vmatpush1.bf16.msra.mxu0 %v292
    %415 = vmatprep.subr.bf16.mxu0 0
    %416 = vmatpush1.bf16.msra.mxu0 0
    %417 = vmatprep.subr.bf16.mxu0 0
    %418 = vmatpush1.bf16.msra.mxu0 0
    %419 = vmatprep.subr.bf16.mxu0 0
    %420 = vmatpush1.bf16.msra.mxu0 0
    %421 = vmatprep.subr.bf16.mxu0 0
    %422 = vmatpush1.bf16.msra.mxu0 0
    %423 = vmatprep.subr.bf16.mxu0 0
    %424 = vmatpush1.bf16.msra.mxu0 0
    %425 = vmatprep.subr.bf16.mxu0 0
    %426 = vmatpush1.bf16.msra.mxu0 0
    %427 = vmatprep.subr.bf16.mxu0 0
    %428 = vmatpush1.bf16.msra.mxu0 0
    %429 = vmatprep.subr.bf16.mxu0 0
    %430 = vmatpush1.bf16.msra.mxu0 0
    %431 = vmatprep.mubr.bf16.mxu0 0
    %432 = vmatmul.mubr.bf16.gmra.mrb[0].mxu0 %v158
    %v433 = vpop.f32.mrb[0].mxu0
    %v434 = vadd.f32 %v133, %v433
    %v435 = vpop.f32.mrb[0].mxu0
    %v436 = vadd.f32 %v137, %v435
    %v437 = vpop.f32.mrb[0].mxu0
    %v438 = vadd.f32 %v133, %v437
    %v439 = vpop.f32.mrb[0].mxu0
    %v440 = vadd.f32 %v137, %v439
    %441 = vmatprep.mubr.bf16.mxu0 0
    %442 = vmatmul.mubr.bf16.gmra.mrb[0].mxu0 %v159
    %v443 = vpop.f32.mrb[0].mxu0
    %v444 = vadd.f32 %v133, %v443
    %v445 = vpop.f32.mrb[0].mxu0
    %v446 = vadd.f32 %v137, %v445
    %v447 = vpop.f32.mrb[0].mxu0
    %v448 = vadd.f32 %v133, %v447
    %v449 = vpop.f32.mrb[0].mxu0
    %v450 = vadd.f32 %v137, %v449
    %451 = vmatprep.mubr.bf16.mxu0 0
    %452 = vmatmul.mubr.bf16.gmra.mrb[0].mxu0 %v160
    %v453 = vpop.f32.mrb[0].mxu0
    %v454 = vadd.f32 %v133, %v453
    %v455 = vpop.f32.mrb[0].mxu0
    %v456 = vadd.f32 %v137, %v455
    %v457 = vpop.f32.mrb[0].mxu0
    %v458 = vadd.f32 %v133, %v457
    %v459 = vpop.f32.mrb[0].mxu0
    %v460 = vadd.f32 %v137, %v459
    %461 = vmatprep.mubr.bf16.mxu0 0
    %462 = vmatmul.mubr.bf16.gmra.mrb[0].mxu0 %v161
    %v463 = vpop.f32.mrb[0].mxu0
    %v464 = vadd.f32 %v133, %v463
    %v465 = vpop.f32.mrb[0].mxu0
    %v466 = vadd.f32 %v137, %v465
    %v467 = vpop.f32.mrb[0].mxu0
    %v468 = vadd.f32 %v133, %v467
    %v469 = vpop.f32.mrb[0].mxu0
    %v470 = vadd.f32 %v137, %v469
    %471 = vdwg.mxu0
    %472 = vst [vmem:[#allocation2] sm:$0xff] %v361
    %473 = vst [vmem:[#allocation2 + $0x8] sm:$0xff] %v363
    %474 = vst [vmem:[#allocation2 + $0x10] sm:$0xff] %v434
    %475 = vst [vmem:[#allocation2 + $0x18] sm:$0xff] %v436
    %476 = vst [vmem:[#allocation2 + $0x20] sm:$0xff] %v365
    %477 = vst [vmem:[#allocation2 + $0x28] sm:$0xff] %v367
    %478 = vst [vmem:[#allocation2 + $0x30] sm:$0xff] %v438
    %479 = vst [vmem:[#allocation2 + $0x38] sm:$0xff] %v440
    %480 = vst [vmem:[#allocation2 + $0x40] sm:$0xff] %v371
    %481 = vst [vmem:[#allocation2 + $0x48] sm:$0xff] %v373
    %482 = vst [vmem:[#allocation2 + $0x50] sm:$0xff] %v444
    %483 = vst [vmem:[#allocation2 + $0x58] sm:$0xff] %v446
    %484 = vst [vmem:[#allocation2 + $0x60] sm:$0xff] %v375
    %485 = vst [vmem:[#allocation2 + $0x68] sm:$0xff] %v377
    %486 = vst [vmem:[#allocation2 + $0x70] sm:$0xff] %v448
    %487 = vst [vmem:[#allocation2 + $0x78] sm:$0xff] %v450
    %488 = vst [vmem:[#allocation2 + $0x80] sm:$0xff] %v381
    %489 = vst [vmem:[#allocation2 + $0x88] sm:$0xff] %v383
    %490 = vst [vmem:[#allocation2 + $0x90] sm:$0xff] %v454
    %491 = vst [vmem:[#allocation2 + $0x98] sm:$0xff] %v456
    %492 = vst [vmem:[#allocation2 + $0xa0] sm:$0xff] %v385
    %493 = vst [vmem:[#allocation2 + $0xa8] sm:$0xff] %v387
    %494 = vst [vmem:[#allocation2 + $0xb0] sm:$0xff] %v458
    %495 = vst [vmem:[#allocation2 + $0xb8] sm:$0xff] %v460
    %496 = vst [vmem:[#allocation2 + $0xc0] sm:$0xff] %v391
    %497 = vst [vmem:[#allocation2 + $0xc8] sm:$0xff] %v393
    %498 = vst [vmem:[#allocation2 + $0xd0] sm:$0xff] %v464
    %499 = vst [vmem:[#allocation2 + $0xd8] sm:$0xff] %v466
    %500 = vst [vmem:[#allocation2 + $0xe0] sm:$0xff] %v395
    %501 = vst [vmem:[#allocation2 + $0xe8] sm:$0xff] %v397
    %502 = vst [vmem:[#allocation2 + $0xf0] sm:$0xff] %v468
    %503 = vst [vmem:[#allocation2 + $0xf8] sm:$0xff] %v470
    %v504 = vld [vmem:[#allocation8] sm:$0xff]
    %v505 = vld [vmem:[#allocation8 + $0x8] sm:$0xff]
    %v506 = vld [vmem:[#allocation8 + $0x10] sm:$0xff]
    %v507 = vld [vmem:[#allocation8 + $0x18] sm:$0xff]
    %v508 = vld [vmem:[#allocation8 + $0x20] sm:$0xff]
    %v509 = vld [vmem:[#allocation8 + $0x28] sm:$0xff]
    %v510 = vld [vmem:[#allocation8 + $0x30] sm:$0xff]
    %v511 = vld [vmem:[#allocation8 + $0x38] sm:$0xff]
    %v512 = vld [vmem:[#allocation8 + $0x40] sm:$0xff]
    %v513 = vld [vmem:[#allocation8 + $0x48] sm:$0xff]
    %v514 = vld [vmem:[#allocation8 + $0x50] sm:$0xff]
    %v515 = vld [vmem:[#allocation8 + $0x58] sm:$0xff]
    %v516 = vld [vmem:[#allocation8 + $0x60] sm:$0xff]
    %v517 = vld [vmem:[#allocation8 + $0x68] sm:$0xff]
    %v518 = vld [vmem:[#allocation8 + $0x70] sm:$0xff]
    %v519 = vld [vmem:[#allocation8 + $0x78] sm:$0xff]
    %v520 = vld [vmem:[#allocation8 + $0x80] sm:$0xff]
    %v521 = vld [vmem:[#allocation8 + $0x88] sm:$0xff]
    %v522 = vld [vmem:[#allocation8 + $0x90] sm:$0xff]
    %v523 = vld [vmem:[#allocation8 + $0x98] sm:$0xff]
    %v524 = vld [vmem:[#allocation8 + $0xa0] sm:$0xff]
    %v525 = vld [vmem:[#allocation8 + $0xa8] sm:$0xff]
    %v526 = vld [vmem:[#allocation8 + $0xb0] sm:$0xff]
    %v527 = vld [vmem:[#allocation8 + $0xb8] sm:$0xff]
    %v528 = vld [vmem:[#allocation8 + $0xc0] sm:$0xff]
    %v529 = vld [vmem:[#allocation8 + $0xc8] sm:$0xff]
    %v530 = vld [vmem:[#allocation8 + $0xd0] sm:$0xff]
    %v531 = vld [vmem:[#allocation8 + $0xd8] sm:$0xff]
    %v532 = vld [vmem:[#allocation8 + $0xe0] sm:$0xff]
    %v533 = vld [vmem:[#allocation8 + $0xe8] sm:$0xff]
    %v534 = vld [vmem:[#allocation8 + $0xf0] sm:$0xff]
    %v535 = vld [vmem:[#allocation8 + $0xf8] sm:$0xff]
    %s536 = smul.u32 0, 4
    %s537 = smul.addr %s536, 8
    %s538 = scalar_lea.vmem [#allocation2], %s537
    %v539 = vld [vmem:[%s538] sm:$0xff]
    %v540 = vld [vmem:[%s538 + $0x8] sm:$0xff]
    %v541 = vld [vmem:[%s538 + $0x10] sm:$0xff]
    %v542 = vld [vmem:[%s538 + $0x18] sm:$0xff]
    %v575 = vunpack.c.l.b16 %v504
    %v576 = vunpack.c.h.b16 %v504
    %v577 = vunpack.c.l.b16 %v505
    %v578 = vunpack.c.h.b16 %v505
    %v579 = vunpack.c.l.b16 %v506
    %v580 = vunpack.c.h.b16 %v506
    %v581 = vunpack.c.l.b16 %v507
    %v582 = vunpack.c.h.b16 %v507
    %v583 = vunpack.c.l.b16 %v508
    %v584 = vunpack.c.h.b16 %v508
    %v585 = vunpack.c.l.b16 %v509
    %v586 = vunpack.c.h.b16 %v509
    %v587 = vunpack.c.l.b16 %v510
    %v588 = vunpack.c.h.b16 %v510
    %v589 = vunpack.c.l.b16 %v511
    %v590 = vunpack.c.h.b16 %v511
    %v591 = vunpack.c.l.b16 %v512
    %v592 = vunpack.c.h.b16 %v512
    %v593 = vunpack.c.l.b16 %v513
    %v594 = vunpack.c.h.b16 %v513
    %v595 = vunpack.c.l.b16 %v514
    %v596 = vunpack.c.h.b16 %v514
    %v597 = vunpack.c.l.b16 %v515
    %v598 = vunpack.c.h.b16 %v515
    %v599 = vunpack.c.l.b16 %v516
    %v600 = vunpack.c.h.b16 %v516
    %v601 = vunpack.c.l.b16 %v517
    %v602 = vunpack.c.h.b16 %v517
    %v603 = vunpack.c.l.b16 %v518
    %v604 = vunpack.c.h.b16 %v518
    %v605 = vunpack.c.l.b16 %v519
    %v606 = vunpack.c.h.b16 %v519
    %v607 = vunpack.c.l.b16 %v520
    %v608 = vunpack.c.h.b16 %v520
    %v609 = vunpack.c.l.b16 %v521
    %v610 = vunpack.c.h.b16 %v521
    %v611 = vunpack.c.l.b16 %v522
    %v612 = vunpack.c.h.b16 %v522
    %v613 = vunpack.c.l.b16 %v523
    %v614 = vunpack.c.h.b16 %v523
    %v615 = vunpack.c.l.b16 %v524
    %v616 = vunpack.c.h.b16 %v524
    %v617 = vunpack.c.l.b16 %v525
    %v618 = vunpack.c.h.b16 %v525
    %v619 = vunpack.c.l.b16 %v526
    %v620 = vunpack.c.h.b16 %v526
    %v621 = vunpack.c.l.b16 %v527
    %v622 = vunpack.c.h.b16 %v527
    %v623 = vunpack.c.l.b16 %v528
    %v624 = vunpack.c.h.b16 %v528
    %v625 = vunpack.c.l.b16 %v529
    %v626 = vunpack.c.h.b16 %v529
    %v627 = vunpack.c.l.b16 %v530
    %v628 = vunpack.c.h.b16 %v530
    %v629 = vunpack.c.l.b16 %v531
    %v630 = vunpack.c.h.b16 %v531
    %v631 = vunpack.c.l.b16 %v532
    %v632 = vunpack.c.h.b16 %v532
    %v633 = vunpack.c.l.b16 %v533
    %v634 = vunpack.c.h.b16 %v533
    %v635 = vunpack.c.l.b16 %v534
    %v636 = vunpack.c.h.b16 %v534
    %v637 = vunpack.c.l.b16 %v535
    %v638 = vunpack.c.h.b16 %v535
    %v639 = vpack.c.b16 %v579, %v575
    %v640 = vpack.c.b16 %v580, %v576
    %v641 = vpack.c.b16 %v581, %v577
    %v642 = vpack.c.b16 %v582, %v578
    %v643 = vpack.c.b16 %v587, %v583
    %v644 = vpack.c.b16 %v588, %v584
    %v645 = vpack.c.b16 %v589, %v585
    %v646 = vpack.c.b16 %v590, %v586
    %v647 = vpack.c.b16 %v595, %v591
    %v648 = vpack.c.b16 %v596, %v592
    %v649 = vpack.c.b16 %v597, %v593
    %v650 = vpack.c.b16 %v598, %v594
    %v651 = vpack.c.b16 %v603, %v599
    %v652 = vpack.c.b16 %v604, %v600
    %v653 = vpack.c.b16 %v605, %v601
    %v654 = vpack.c.b16 %v606, %v602
    %v655 = vpack.c.b16 %v611, %v607
    %v656 = vpack.c.b16 %v612, %v608
    %v657 = vpack.c.b16 %v613, %v609
    %v658 = vpack.c.b16 %v614, %v610
    %v659 = vpack.c.b16 %v619, %v615
    %v660 = vpack.c.b16 %v620, %v616
    %v661 = vpack.c.b16 %v621, %v617
    %v662 = vpack.c.b16 %v622, %v618
    %v663 = vpack.c.b16 %v627, %v623
    %v664 = vpack.c.b16 %v628, %v624
    %v665 = vpack.c.b16 %v629, %v625
    %v666 = vpack.c.b16 %v630, %v626
    %v667 = vpack.c.b16 %v635, %v631
    %v668 = vpack.c.b16 %v636, %v632
    %v669 = vpack.c.b16 %v637, %v633
    %v670 = vpack.c.b16 %v638, %v634
    %703 = vmatprep.subr.bf16.mxu0 %v640
    %704 = vmatpush1.bf16.msra.mxu0 %v639
    %705 = vmatprep.subr.bf16.mxu0 %v644
    %706 = vmatpush1.bf16.msra.mxu0 %v643
    %707 = vmatprep.subr.bf16.mxu0 %v648
    %708 = vmatpush1.bf16.msra.mxu0 %v647
    %709 = vmatprep.subr.bf16.mxu0 %v652
    %710 = vmatpush1.bf16.msra.mxu0 %v651
    %711 = vmatprep.subr.bf16.mxu0 %v656
    %712 = vmatpush1.bf16.msra.mxu0 %v655
    %713 = vmatprep.subr.bf16.mxu0 %v660
    %714 = vmatpush1.bf16.msra.mxu0 %v659
    %715 = vmatprep.subr.bf16.mxu0 %v664
    %716 = vmatpush1.bf16.msra.mxu0 %v663
    %717 = vmatprep.subr.bf16.mxu0 %v668
    %718 = vmatpush1.bf16.msra.mxu0 %v667
    %719 = vmatprep.subr.bf16.mxu0 0
    %720 = vmatpush1.bf16.msra.mxu0 0
    %721 = vmatprep.subr.bf16.mxu0 0
    %722 = vmatpush1.bf16.msra.mxu0 0
    %723 = vmatprep.subr.bf16.mxu0 0
    %724 = vmatpush1.bf16.msra.mxu0 0
    %725 = vmatprep.subr.bf16.mxu0 0
    %726 = vmatpush1.bf16.msra.mxu0 0
    %727 = vmatprep.subr.bf16.mxu0 0
    %728 = vmatpush1.bf16.msra.mxu0 0
    %729 = vmatprep.subr.bf16.mxu0 0
    %730 = vmatpush1.bf16.msra.mxu0 0
    %731 = vmatprep.subr.bf16.mxu0 0
    %732 = vmatpush1.bf16.msra.mxu0 0
    %733 = vmatprep.subr.bf16.mxu0 0
    %734 = vmatpush1.bf16.msra.mxu0 0
    %735 = vmatprep.mubr.bf16.mxu0 0
    %736 = vmatmul.mubr.bf16.gmra.mrb[0].mxu0 0
    %v737 = vpop.f32.mrb[0].mxu0
    %v738 = vadd.f32 0.0, %v737
    %v739 = vpop.f32.mrb[0].mxu0
    %v740 = vadd.f32 0.0, %v739
    %v741 = vpop.f32.mrb[0].mxu0
    %v742 = vpop.f32.mrb[0].mxu0
    %743 = vdwg.mxu0
    %744 = vmatprep.subr.bf16.mxu0 %v642
    %745 = vmatpush1.bf16.msra.mxu0 %v641
    %746 = vmatprep.subr.bf16.mxu0 %v646
    %747 = vmatpush1.bf16.msra.mxu0 %v645
    %748 = vmatprep.subr.bf16.mxu0 %v650
    %749 = vmatpush1.bf16.msra.mxu0 %v649
    %750 = vmatprep.subr.bf16.mxu0 %v654
    %751 = vmatpush1.bf16.msra.mxu0 %v653
    %752 = vmatprep.subr.bf16.mxu0 %v658
    %753 = vmatpush1.bf16.msra.mxu0 %v657
    %754 = vmatprep.subr.bf16.mxu0 %v662
    %755 = vmatpush1.bf16.msra.mxu0 %v661
    %756 = vmatprep.subr.bf16.mxu0 %v666
    %757 = vmatpush1.bf16.msra.mxu0 %v665
    %758 = vmatprep.subr.bf16.mxu0 %v670
    %759 = vmatpush1.bf16.msra.mxu0 %v669
    %760 = vmatprep.subr.bf16.mxu0 0
    %761 = vmatpush1.bf16.msra.mxu0 0
    %762 = vmatprep.subr.bf16.mxu0 0
    %763 = vmatpush1.bf16.msra.mxu0 0
    %764 = vmatprep.subr.bf16.mxu0 0
    %765 = vmatpush1.bf16.msra.mxu0 0
    %766 = vmatprep.subr.bf16.mxu0 0
    %767 = vmatpush1.bf16.msra.mxu0 0
    %768 = vmatprep.subr.bf16.mxu0 0
    %769 = vmatpush1.bf16.msra.mxu0 0
    %770 = vmatprep.subr.bf16.mxu0 0
    %771 = vmatpush1.bf16.msra.mxu0 0
    %772 = vmatprep.subr.bf16.mxu0 0
    %773 = vmatpush1.bf16.msra.mxu0 0
    %774 = vmatprep.subr.bf16.mxu0 0
    %775 = vmatpush1.bf16.msra.mxu0 0
    %776 = vmatprep.mubr.bf16.mxu0 0
    %777 = vmatmul.mubr.bf16.gmra.mrb[0].mxu0 0
    %v778 = vpop.f32.mrb[0].mxu0
    %v779 = vadd.f32 0.0, %v778
    %v780 = vpop.f32.mrb[0].mxu0
    %v781 = vadd.f32 0.0, %v780
    %v782 = vpop.f32.mrb[0].mxu0
    %v783 = vpop.f32.mrb[0].mxu0
    %784 = vdwg.mxu0
    %v785 = vadd.f32 %v539, %v738
    %v786 = vadd.f32 %v540, %v740
    %v787 = vadd.f32 %v541, %v779
    %v788 = vadd.f32 %v542, %v781
    %v789 = vxor.u32 %v785, 2147483648
    %v790 = vmul.f32 %v789, 1.442695
    %v791 = vpow.pop %v790
    %v792 = vadd.f32 %v791, 1.0
    %v793 = vrcp.pop %v792
    %v794 = vmul.f32 1.0, %v793
    %v795 = vxor.u32 %v786, 2147483648
    %v796 = vmul.f32 %v795, 1.442695
    %v797 = vpow.pop %v796
    %v798 = vadd.f32 %v797, 1.0
    %v799 = vrcp.pop %v798
    %v800 = vmul.f32 1.0, %v799
    %v801 = vtanh.pop %v787
    %v802 = vxor.u32 %v788, 2147483648
    %v803 = vmul.f32 %v802, 1.442695
    %v804 = vpow.pop %v803
    %v805 = vadd.f32 %v804, 1.0
    %v806 = vrcp.pop %v805
    %v807 = vmul.f32 1.0, %v806
    %v808 = vmul.f32 %v800, 0.0
    %v809 = vmul.f32 %v794, %v801
    %v810 = vadd.f32 %v808, %v809
    %v811 = vtanh.pop %v810
    %v812 = vmul.f32 %v807, %v811
    %s813 = smul.u32 1, 4
    %s814 = smul.addr %s813, 8
    %s815 = scalar_lea.vmem [#allocation2], %s814
    %v816 = vld [vmem:[%s815] sm:$0xff]
    %v817 = vld [vmem:[%s815 + $0x8] sm:$0xff]
    %v818 = vld [vmem:[%s815 + $0x10] sm:$0xff]
    %v819 = vld [vmem:[%s815 + $0x18] sm:$0xff]
    %v820 = vpack.c.bf16 %v812, %v812
    %821 = vmatprep.subr.bf16.mxu0 %v640
    %822 = vmatpush1.bf16.msra.mxu0 %v639
    %823 = vmatprep.subr.bf16.mxu0 %v644
    %824 = vmatpush1.bf16.msra.mxu0 %v643
    %825 = vmatprep.subr.bf16.mxu0 %v648
    %826 = vmatpush1.bf16.msra.mxu0 %v647
    %827 = vmatprep.subr.bf16.mxu0 %v652
    %828 = vmatpush1.bf16.msra.mxu0 %v651
    %829 = vmatprep.subr.bf16.mxu0 %v656
    %830 = vmatpush1.bf16.msra.mxu0 %v655
    %831 = vmatprep.subr.bf16.mxu0 %v660
    %832 = vmatpush1.bf16.msra.mxu0 %v659
    %833 = vmatprep.subr.bf16.mxu0 %v664
    %834 = vmatpush1.bf16.msra.mxu0 %v663
    %835 = vmatprep.subr.bf16.mxu0 %v668
    %836 = vmatpush1.bf16.msra.mxu0 %v667
    %837 = vmatprep.subr.bf16.mxu0 0
    %838 = vmatpush1.bf16.msra.mxu0 0
    %839 = vmatprep.subr.bf16.mxu0 0
    %840 = vmatpush1.bf16.msra.mxu0 0
    %841 = vmatprep.subr.bf16.mxu0 0
    %842 = vmatpush1.bf16.msra.mxu0 0
    %843 = vmatprep.subr.bf16.mxu0 0
    %844 = vmatpush1.bf16.msra.mxu0 0
    %845 = vmatprep.subr.bf16.mxu0 0
    %846 = vmatpush1.bf16.msra.mxu0 0
    %847 = vmatprep.subr.bf16.mxu0 0
    %848 = vmatpush1.bf16.msra.mxu0 0
    %849 = vmatprep.subr.bf16.mxu0 0
    %850 = vmatpush1.bf16.msra.mxu0 0
    %851 = vmatprep.subr.bf16.mxu0 0
    %852 = vmatpush1.bf16.msra.mxu0 0
    %853 = vmatprep.mubr.bf16.mxu0 0
    %854 = vmatmul.mubr.bf16.gmra.mrb[0].mxu0 %v820
    %v855 = vpop.f32.mrb[0].mxu0
    %v856 = vadd.f32 0.0, %v855
    %v857 = vpop.f32.mrb[0].mxu0
    %v858 = vadd.f32 0.0, %v857
    %v859 = vpop.f32.mrb[0].mxu0
    %v860 = vpop.f32.mrb[0].mxu0
    %861 = vdwg.mxu0
    %862 = vmatprep.subr.bf16.mxu0 %v642
    %863 = vmatpush1.bf16.msra.mxu0 %v641
    %864 = vmatprep.subr.bf16.mxu0 %v646
    %865 = vmatpush1.bf16.msra.mxu0 %v645
    %866 = vmatprep.subr.bf16.mxu0 %v650
    %867 = vmatpush1.bf16.msra.mxu0 %v649
    %868 = vmatprep.subr.bf16.mxu0 %v654
    %869 = vmatpush1.bf16.msra.mxu0 %v653
    %870 = vmatprep.subr.bf16.mxu0 %v658
    %871 = vmatpush1.bf16.msra.mxu0 %v657
    %872 = vmatprep.subr.bf16.mxu0 %v662
    %873 = vmatpush1.bf16.msra.mxu0 %v661
    %874 = vmatprep.subr.bf16.mxu0 %v666
    %875 = vmatpush1.bf16.msra.mxu0 %v665
    %876 = vmatprep.subr.bf16.mxu0 %v670
    %877 = vmatpush1.bf16.msra.mxu0 %v669
    %878 = vmatprep.subr.bf16.mxu0 0
    %879 = vmatpush1.bf16.msra.mxu0 0
    %880 = vmatprep.subr.bf16.mxu0 0
    %881 = vmatpush1.bf16.msra.mxu0 0
    %882 = vmatprep.subr.bf16.mxu0 0
    %883 = vmatpush1.bf16.msra.mxu0 0
    %884 = vmatprep.subr.bf16.mxu0 0
    %885 = vmatpush1.bf16.msra.mxu0 0
    %886 = vmatprep.subr.bf16.mxu0 0
    %887 = vmatpush1.bf16.msra.mxu0 0
    %888 = vmatprep.subr.bf16.mxu0 0
    %889 = vmatpush1.bf16.msra.mxu0 0
    %890 = vmatprep.subr.bf16.mxu0 0
    %891 = vmatpush1.bf16.msra.mxu0 0
    %892 = vmatprep.subr.bf16.mxu0 0
    %893 = vmatpush1.bf16.msra.mxu0 0
    %894 = vmatprep.mubr.bf16.mxu0 0
    %895 = vmatmul.mubr.bf16.gmra.mrb[0].mxu0 %v820
    %v896 = vpop.f32.mrb[0].mxu0
    %v897 = vadd.f32 0.0, %v896
    %v898 = vpop.f32.mrb[0].mxu0
    %v899 = vadd.f32 0.0, %v898
    %v900 = vpop.f32.mrb[0].mxu0
    %v901 = vpop.f32.mrb[0].mxu0
    %902 = vdwg.mxu0
    %v903 = vadd.f32 %v816, %v856
    %v904 = vadd.f32 %v817, %v858
    %v905 = vadd.f32 %v818, %v897
    %v906 = vadd.f32 %v819, %v899
    %v907 = vxor.u32 %v903, 2147483648
    %v908 = vmul.f32 %v907, 1.442695
    %v909 = vpow.pop %v908
    %v910 = vadd.f32 %v909, 1.0
    %v911 = vrcp.pop %v910
    %v912 = vmul.f32 1.0, %v911
    %v913 = vxor.u32 %v904, 2147483648
    %v914 = vmul.f32 %v913, 1.442695
    %v915 = vpow.pop %v914
    %v916 = vadd.f32 %v915, 1.0
    %v917 = vrcp.pop %v916
    %v918 = vmul.f32 1.0, %v917
    %v919 = vtanh.pop %v905
    %v920 = vxor.u32 %v906, 2147483648
    %v921 = vmul.f32 %v920, 1.442695
    %v922 = vpow.pop %v921
    %v923 = vadd.f32 %v922, 1.0
    %v924 = vrcp.pop %v923
    %v925 = vmul.f32 1.0, %v924
    %v926 = vmul.f32 %v918, %v810
    %v927 = vmul.f32 %v912, %v919
    %v928 = vadd.f32 %v926, %v927
    %v929 = vtanh.pop %v928
    %v930 = vmul.f32 %v925, %v929
    %s931 = smul.u32 2, 4
    %s932 = smul.addr %s931, 8
    %s933 = scalar_lea.vmem [#allocation2], %s932
    %v934 = vld [vmem:[%s933] sm:$0xff]
    %v935 = vld [vmem:[%s933 + $0x8] sm:$0xff]
    %v936 = vld [vmem:[%s933 + $0x10] sm:$0xff]
    %v937 = vld [vmem:[%s933 + $0x18] sm:$0xff]
    %v938 = vpack.c.bf16 %v930, %v930
    %939 = vmatprep.subr.bf16.mxu0 %v640
    %940 = vmatpush1.bf16.msra.mxu0 %v639
    %941 = vmatprep.subr.bf16.mxu0 %v644
    %942 = vmatpush1.bf16.msra.mxu0 %v643
    %943 = vmatprep.subr.bf16.mxu0 %v648
    %944 = vmatpush1.bf16.msra.mxu0 %v647
    %945 = vmatprep.subr.bf16.mxu0 %v652
    %946 = vmatpush1.bf16.msra.mxu0 %v651
    %947 = vmatprep.subr.bf16.mxu0 %v656
    %948 = vmatpush1.bf16.msra.mxu0 %v655
    %949 = vmatprep.subr.bf16.mxu0 %v660
    %950 = vmatpush1.bf16.msra.mxu0 %v659
    %951 = vmatprep.subr.bf16.mxu0 %v664
    %952 = vmatpush1.bf16.msra.mxu0 %v663
    %953 = vmatprep.subr.bf16.mxu0 %v668
    %954 = vmatpush1.bf16.msra.mxu0 %v667
    %955 = vmatprep.subr.bf16.mxu0 0
    %956 = vmatpush1.bf16.msra.mxu0 0
    %957 = vmatprep.subr.bf16.mxu0 0
    %958 = vmatpush1.bf16.msra.mxu0 0
    %959 = vmatprep.subr.bf16.mxu0 0
    %960 = vmatpush1.bf16.msra.mxu0 0
    %961 = vmatprep.subr.bf16.mxu0 0
    %962 = vmatpush1.bf16.msra.mxu0 0
    %963 = vmatprep.subr.bf16.mxu0 0
    %964 = vmatpush1.bf16.msra.mxu0 0
    %965 = vmatprep.subr.bf16.mxu0 0
    %966 = vmatpush1.bf16.msra.mxu0 0
    %967 = vmatprep.subr.bf16.mxu0 0
    %968 = vmatpush1.bf16.msra.mxu0 0
    %969 = vmatprep.subr.bf16.mxu0 0
    %970 = vmatpush1.bf16.msra.mxu0 0
    %971 = vmatprep.mubr.bf16.mxu0 0
    %972 = vmatmul.mubr.bf16.gmra.mrb[0].mxu0 %v938
    %v973 = vpop.f32.mrb[0].mxu0
    %v974 = vadd.f32 0.0, %v973
    %v975 = vpop.f32.mrb[0].mxu0
    %v976 = vadd.f32 0.0, %v975
    %v977 = vpop.f32.mrb[0].mxu0
    %v978 = vpop.f32.mrb[0].mxu0
    %979 = vdwg.mxu0
    %980 = vmatprep.subr.bf16.mxu0 %v642
    %981 = vmatpush1.bf16.msra.mxu0 %v641
    %982 = vmatprep.subr.bf16.mxu0 %v646
    %983 = vmatpush1.bf16.msra.mxu0 %v645
    %984 = vmatprep.subr.bf16.mxu0 %v650
    %985 = vmatpush1.bf16.msra.mxu0 %v649
    %986 = vmatprep.subr.bf16.mxu0 %v654
    %987 = vmatpush1.bf16.msra.mxu0 %v653
    %988 = vmatprep.subr.bf16.mxu0 %v658
    %989 = vmatpush1.bf16.msra.mxu0 %v657
    %990 = vmatprep.subr.bf16.mxu0 %v662
    %991 = vmatpush1.bf16.msra.mxu0 %v661
    %992 = vmatprep.subr.bf16.mxu0 %v666
    %993 = vmatpush1.bf16.msra.mxu0 %v665
    %994 = vmatprep.subr.bf16.mxu0 %v670
    %995 = vmatpush1.bf16.msra.mxu0 %v669
    %996 = vmatprep.subr.bf16.mxu0 0
    %997 = vmatpush1.bf16.msra.mxu0 0
    %998 = vmatprep.subr.bf16.mxu0 0
    %999 = vmatpush1.bf16.msra.mxu0 0
    %1000 = vmatprep.subr.bf16.mxu0 0
    %1001 = vmatpush1.bf16.msra.mxu0 0
    %1002 = vmatprep.subr.bf16.mxu0 0
    %1003 = vmatpush1.bf16.msra.mxu0 0
    %1004 = vmatprep.subr.bf16.mxu0 0
    %1005 = vmatpush1.bf16.msra.mxu0 0
    %1006 = vmatprep.subr.bf16.mxu0 0
    %1007 = vmatpush1.bf16.msra.mxu0 0
    %1008 = vmatprep.subr.bf16.mxu0 0
    %1009 = vmatpush1.bf16.msra.mxu0 0
    %1010 = vmatprep.subr.bf16.mxu0 0
    %1011 = vmatpush1.bf16.msra.mxu0 0
    %1012 = vmatprep.mubr.bf16.mxu0 0
    %1013 = vmatmul.mubr.bf16.gmra.mrb[0].mxu0 %v938
    %v1014 = vpop.f32.mrb[0].mxu0
    %v1015 = vadd.f32 0.0, %v1014
    %v1016 = vpop.f32.mrb[0].mxu0
    %v1017 = vadd.f32 0.0, %v1016
    %v1018 = vpop.f32.mrb[0].mxu0
    %v1019 = vpop.f32.mrb[0].mxu0
    %1020 = vdwg.mxu0
    %v1021 = vadd.f32 %v934, %v974
    %v1022 = vadd.f32 %v935, %v976
    %v1023 = vadd.f32 %v936, %v1015
    %v1024 = vadd.f32 %v937, %v1017
    %v1025 = vxor.u32 %v1021, 2147483648
    %v1026 = vmul.f32 %v1025, 1.442695
    %v1027 = vpow.pop %v1026
    %v1028 = vadd.f32 %v1027, 1.0
    %v1029 = vrcp.pop %v1028
    %v1030 = vmul.f32 1.0, %v1029
    %v1031 = vxor.u32 %v1022, 2147483648
    %v1032 = vmul.f32 %v1031, 1.442695
    %v1033 = vpow.pop %v1032
    %v1034 = vadd.f32 %v1033, 1.0
    %v1035 = vrcp.pop %v1034
    %v1036 = vmul.f32 1.0, %v1035
    %v1037 = vtanh.pop %v1023
    %v1038 = vxor.u32 %v1024, 2147483648
    %v1039 = vmul.f32 %v1038, 1.442695
    %v1040 = vpow.pop %v1039
    %v1041 = vadd.f32 %v1040, 1.0
    %v1042 = vrcp.pop %v1041
    %v1043 = vmul.f32 1.0, %v1042
    %v1044 = vmul.f32 %v1036, %v928
    %v1045 = vmul.f32 %v1030, %v1037
    %v1046 = vadd.f32 %v1044, %v1045
    %v1047 = vtanh.pop %v1046
    %v1048 = vmul.f32 %v1043, %v1047
    %s1049 = smul.u32 3, 4
    %s1050 = smul.addr %s1049, 8
    %s1051 = scalar_lea.vmem [#allocation2], %s1050
    %v1052 = vld [vmem:[%s1051] sm:$0xff]
    %v1053 = vld [vmem:[%s1051 + $0x8] sm:$0xff]
    %v1054 = vld [vmem:[%s1051 + $0x10] sm:$0xff]
    %v1055 = vld [vmem:[%s1051 + $0x18] sm:$0xff]
    %v1056 = vpack.c.bf16 %v1048, %v1048
    %1057 = vmatprep.subr.bf16.mxu0 %v640
    %1058 = vmatpush1.bf16.msra.mxu0 %v639
    %1059 = vmatprep.subr.bf16.mxu0 %v644
    %1060 = vmatpush1.bf16.msra.mxu0 %v643
    %1061 = vmatprep.subr.bf16.mxu0 %v648
    %1062 = vmatpush1.bf16.msra.mxu0 %v647
    %1063 = vmatprep.subr.bf16.mxu0 %v652
    %1064 = vmatpush1.bf16.msra.mxu0 %v651
    %1065 = vmatprep.subr.bf16.mxu0 %v656
    %1066 = vmatpush1.bf16.msra.mxu0 %v655
    %1067 = vmatprep.subr.bf16.mxu0 %v660
    %1068 = vmatpush1.bf16.msra.mxu0 %v659
    %1069 = vmatprep.subr.bf16.mxu0 %v664
    %1070 = vmatpush1.bf16.msra.mxu0 %v663
    %1071 = vmatprep.subr.bf16.mxu0 %v668
    %1072 = vmatpush1.bf16.msra.mxu0 %v667
    %1073 = vmatprep.subr.bf16.mxu0 0
    %1074 = vmatpush1.bf16.msra.mxu0 0
    %1075 = vmatprep.subr.bf16.mxu0 0
    %1076 = vmatpush1.bf16.msra.mxu0 0
    %1077 = vmatprep.subr.bf16.mxu0 0
    %1078 = vmatpush1.bf16.msra.mxu0 0
    %1079 = vmatprep.subr.bf16.mxu0 0
    %1080 = vmatpush1.bf16.msra.mxu0 0
    %1081 = vmatprep.subr.bf16.mxu0 0
    %1082 = vmatpush1.bf16.msra.mxu0 0
    %1083 = vmatprep.subr.bf16.mxu0 0
    %1084 = vmatpush1.bf16.msra.mxu0 0
    %1085 = vmatprep.subr.bf16.mxu0 0
    %1086 = vmatpush1.bf16.msra.mxu0 0
    %1087 = vmatprep.subr.bf16.mxu0 0
    %1088 = vmatpush1.bf16.msra.mxu0 0
    %1089 = vmatprep.mubr.bf16.mxu0 0
    %1090 = vmatmul.mubr.bf16.gmra.mrb[0].mxu0 %v1056
    %v1091 = vpop.f32.mrb[0].mxu0
    %v1092 = vadd.f32 0.0, %v1091
    %v1093 = vpop.f32.mrb[0].mxu0
    %v1094 = vadd.f32 0.0, %v1093
    %v1095 = vpop.f32.mrb[0].mxu0
    %v1096 = vpop.f32.mrb[0].mxu0
    %1097 = vdwg.mxu0
    %1098 = vmatprep.subr.bf16.mxu0 %v642
    %1099 = vmatpush1.bf16.msra.mxu0 %v641
    %1100 = vmatprep.subr.bf16.mxu0 %v646
    %1101 = vmatpush1.bf16.msra.mxu0 %v645
    %1102 = vmatprep.subr.bf16.mxu0 %v650
    %1103 = vmatpush1.bf16.msra.mxu0 %v649
    %1104 = vmatprep.subr.bf16.mxu0 %v654
    %1105 = vmatpush1.bf16.msra.mxu0 %v653
    %1106 = vmatprep.subr.bf16.mxu0 %v658
    %1107 = vmatpush1.bf16.msra.mxu0 %v657
    %1108 = vmatprep.subr.bf16.mxu0 %v662
    %1109 = vmatpush1.bf16.msra.mxu0 %v661
    %1110 = vmatprep.subr.bf16.mxu0 %v666
    %1111 = vmatpush1.bf16.msra.mxu0 %v665
    %1112 = vmatprep.subr.bf16.mxu0 %v670
    %1113 = vmatpush1.bf16.msra.mxu0 %v669
    %1114 = vmatprep.subr.bf16.mxu0 0
    %1115 = vmatpush1.bf16.msra.mxu0 0
    %1116 = vmatprep.subr.bf16.mxu0 0
    %1117 = vmatpush1.bf16.msra.mxu0 0
    %1118 = vmatprep.subr.bf16.mxu0 0
    %1119 = vmatpush1.bf16.msra.mxu0 0
    %1120 = vmatprep.subr.bf16.mxu0 0
    %1121 = vmatpush1.bf16.msra.mxu0 0
    %1122 = vmatprep.subr.bf16.mxu0 0
    %1123 = vmatpush1.bf16.msra.mxu0 0
    %1124 = vmatprep.subr.bf16.mxu0 0
    %1125 = vmatpush1.bf16.msra.mxu0 0
    %1126 = vmatprep.subr.bf16.mxu0 0
    %1127 = vmatpush1.bf16.msra.mxu0 0
    %1128 = vmatprep.subr.bf16.mxu0 0
    %1129 = vmatpush1.bf16.msra.mxu0 0
    %1130 = vmatprep.mubr.bf16.mxu0 0
    %1131 = vmatmul.mubr.bf16.gmra.mrb[0].mxu0 %v1056
    %v1132 = vpop.f32.mrb[0].mxu0
    %v1133 = vadd.f32 0.0, %v1132
    %v1134 = vpop.f32.mrb[0].mxu0
    %v1135 = vadd.f32 0.0, %v1134
    %v1136 = vpop.f32.mrb[0].mxu0
    %v1137 = vpop.f32.mrb[0].mxu0
    %1138 = vdwg.mxu0
    %v1139 = vadd.f32 %v1052, %v1092
    %v1140 = vadd.f32 %v1053, %v1094
    %v1141 = vadd.f32 %v1054, %v1133
    %v1142 = vadd.f32 %v1055, %v1135
    %v1143 = vxor.u32 %v1139, 2147483648
    %v1144 = vmul.f32 %v1143, 1.442695
    %v1145 = vpow.pop %v1144
    %v1146 = vadd.f32 %v1145, 1.0
    %v1147 = vrcp.pop %v1146
    %v1148 = vmul.f32 1.0, %v1147
    %v1149 = vxor.u32 %v1140, 2147483648
    %v1150 = vmul.f32 %v1149, 1.442695
    %v1151 = vpow.pop %v1150
    %v1152 = vadd.f32 %v1151, 1.0
    %v1153 = vrcp.pop %v1152
    %v1154 = vmul.f32 1.0, %v1153
    %v1155 = vtanh.pop %v1141
    %v1156 = vxor.u32 %v1142, 2147483648
    %v1157 = vmul.f32 %v1156, 1.442695
    %v1158 = vpow.pop %v1157
    %v1159 = vadd.f32 %v1158, 1.0
    %v1160 = vrcp.pop %v1159
    %v1161 = vmul.f32 1.0, %v1160
    %v1162 = vmul.f32 %v1154, %v1046
    %v1163 = vmul.f32 %v1148, %v1155
    %v1164 = vadd.f32 %v1162, %v1163
    %v1165 = vtanh.pop %v1164
    %v1166 = vmul.f32 %v1161, %v1165
    %s1167 = smul.u32 4, 4
    %s1168 = smul.addr %s1167, 8
    %s1169 = scalar_lea.vmem [#allocation2], %s1168
    %v1170 = vld [vmem:[%s1169] sm:$0xff]
    %v1171 = vld [vmem:[%s1169 + $0x8] sm:$0xff]
    %v1172 = vld [vmem:[%s1169 + $0x10] sm:$0xff]
    %v1173 = vld [vmem:[%s1169 + $0x18] sm:$0xff]
    %v1174 = vpack.c.bf16 %v1166, %v1166
    %1175 = vmatprep.subr.bf16.mxu0 %v640
    %1176 = vmatpush1.bf16.msra.mxu0 %v639
    %1177 = vmatprep.subr.bf16.mxu0 %v644
    %1178 = vmatpush1.bf16.msra.mxu0 %v643
    %1179 = vmatprep.subr.bf16.mxu0 %v648
    %1180 = vmatpush1.bf16.msra.mxu0 %v647
    %1181 = vmatprep.subr.bf16.mxu0 %v652
    %1182 = vmatpush1.bf16.msra.mxu0 %v651
    %1183 = vmatprep.subr.bf16.mxu0 %v656
    %1184 = vmatpush1.bf16.msra.mxu0 %v655
    %1185 = vmatprep.subr.bf16.mxu0 %v660
    %1186 = vmatpush1.bf16.msra.mxu0 %v659
    %1187 = vmatprep.subr.bf16.mxu0 %v664
    %1188 = vmatpush1.bf16.msra.mxu0 %v663
    %1189 = vmatprep.subr.bf16.mxu0 %v668
    %1190 = vmatpush1.bf16.msra.mxu0 %v667
    %1191 = vmatprep.subr.bf16.mxu0 0
    %1192 = vmatpush1.bf16.msra.mxu0 0
    %1193 = vmatprep.subr.bf16.mxu0 0
    %1194 = vmatpush1.bf16.msra.mxu0 0
    %1195 = vmatprep.subr.bf16.mxu0 0
    %1196 = vmatpush1.bf16.msra.mxu0 0
    %1197 = vmatprep.subr.bf16.mxu0 0
    %1198 = vmatpush1.bf16.msra.mxu0 0
    %1199 = vmatprep.subr.bf16.mxu0 0
    %1200 = vmatpush1.bf16.msra.mxu0 0
    %1201 = vmatprep.subr.bf16.mxu0 0
    %1202 = vmatpush1.bf16.msra.mxu0 0
    %1203 = vmatprep.subr.bf16.mxu0 0
    %1204 = vmatpush1.bf16.msra.mxu0 0
    %1205 = vmatprep.subr.bf16.mxu0 0
    %1206 = vmatpush1.bf16.msra.mxu0 0
    %1207 = vmatprep.mubr.bf16.mxu0 0
    %1208 = vmatmul.mubr.bf16.gmra.mrb[0].mxu0 %v1174
    %v1209 = vpop.f32.mrb[0].mxu0
    %v1210 = vadd.f32 0.0, %v1209
    %v1211 = vpop.f32.mrb[0].mxu0
    %v1212 = vadd.f32 0.0, %v1211
    %v1213 = vpop.f32.mrb[0].mxu0
    %v1214 = vpop.f32.mrb[0].mxu0
    %1215 = vdwg.mxu0
    %1216 = vmatprep.subr.bf16.mxu0 %v642
    %1217 = vmatpush1.bf16.msra.mxu0 %v641
    %1218 = vmatprep.subr.bf16.mxu0 %v646
    %1219 = vmatpush1.bf16.msra.mxu0 %v645
    %1220 = vmatprep.subr.bf16.mxu0 %v650
    %1221 = vmatpush1.bf16.msra.mxu0 %v649
    %1222 = vmatprep.subr.bf16.mxu0 %v654
    %1223 = vmatpush1.bf16.msra.mxu0 %v653
    %1224 = vmatprep.subr.bf16.mxu0 %v658
    %1225 = vmatpush1.bf16.msra.mxu0 %v657
    %1226 = vmatprep.subr.bf16.mxu0 %v662
    %1227 = vmatpush1.bf16.msra.mxu0 %v661
    %1228 = vmatprep.subr.bf16.mxu0 %v666
    %1229 = vmatpush1.bf16.msra.mxu0 %v665
    %1230 = vmatprep.subr.bf16.mxu0 %v670
    %1231 = vmatpush1.bf16.msra.mxu0 %v669
    %1232 = vmatprep.subr.bf16.mxu0 0
    %1233 = vmatpush1.bf16.msra.mxu0 0
    %1234 = vmatprep.subr.bf16.mxu0 0
    %1235 = vmatpush1.bf16.msra.mxu0 0
    %1236 = vmatprep.subr.bf16.mxu0 0
    %1237 = vmatpush1.bf16.msra.mxu0 0
    %1238 = vmatprep.subr.bf16.mxu0 0
    %1239 = vmatpush1.bf16.msra.mxu0 0
    %1240 = vmatprep.subr.bf16.mxu0 0
    %1241 = vmatpush1.bf16.msra.mxu0 0
    %1242 = vmatprep.subr.bf16.mxu0 0
    %1243 = vmatpush1.bf16.msra.mxu0 0
    %1244 = vmatprep.subr.bf16.mxu0 0
    %1245 = vmatpush1.bf16.msra.mxu0 0
    %1246 = vmatprep.subr.bf16.mxu0 0
    %1247 = vmatpush1.bf16.msra.mxu0 0
    %1248 = vmatprep.mubr.bf16.mxu0 0
    %1249 = vmatmul.mubr.bf16.gmra.mrb[0].mxu0 %v1174
    %v1250 = vpop.f32.mrb[0].mxu0
    %v1251 = vadd.f32 0.0, %v1250
    %v1252 = vpop.f32.mrb[0].mxu0
    %v1253 = vadd.f32 0.0, %v1252
    %v1254 = vpop.f32.mrb[0].mxu0
    %v1255 = vpop.f32.mrb[0].mxu0
    %1256 = vdwg.mxu0
    %v1257 = vadd.f32 %v1170, %v1210
    %v1258 = vadd.f32 %v1171, %v1212
    %v1259 = vadd.f32 %v1172, %v1251
    %v1260 = vadd.f32 %v1173, %v1253
    %v1261 = vxor.u32 %v1257, 2147483648
    %v1262 = vmul.f32 %v1261, 1.442695
    %v1263 = vpow.pop %v1262
    %v1264 = vadd.f32 %v1263, 1.0
    %v1265 = vrcp.pop %v1264
    %v1266 = vmul.f32 1.0, %v1265
    %v1267 = vxor.u32 %v1258, 2147483648
    %v1268 = vmul.f32 %v1267, 1.442695
    %v1269 = vpow.pop %v1268
    %v1270 = vadd.f32 %v1269, 1.0
    %v1271 = vrcp.pop %v1270
    %v1272 = vmul.f32 1.0, %v1271
    %v1273 = vtanh.pop %v1259
    %v1274 = vxor.u32 %v1260, 2147483648
    %v1275 = vmul.f32 %v1274, 1.442695
    %v1276 = vpow.pop %v1275
    %v1277 = vadd.f32 %v1276, 1.0
    %v1278 = vrcp.pop %v1277
    %v1279 = vmul.f32 1.0, %v1278
    %v1280 = vmul.f32 %v1272, %v1164
    %v1281 = vmul.f32 %v1266, %v1273
    %v1282 = vadd.f32 %v1280, %v1281
    %v1283 = vtanh.pop %v1282
    %v1284 = vmul.f32 %v1279, %v1283
    %s1285 = smul.u32 5, 4
    %s1286 = smul.addr %s1285, 8
    %s1287 = scalar_lea.vmem [#allocation2], %s1286
    %v1288 = vld [vmem:[%s1287] sm:$0xff]
    %v1289 = vld [vmem:[%s1287 + $0x8] sm:$0xff]
    %v1290 = vld [vmem:[%s1287 + $0x10] sm:$0xff]
    %v1291 = vld [vmem:[%s1287 + $0x18] sm:$0xff]
    %v1292 = vpack.c.bf16 %v1284, %v1284
    %1293 = vmatprep.subr.bf16.mxu0 %v640
    %1294 = vmatpush1.bf16.msra.mxu0 %v639
    %1295 = vmatprep.subr.bf16.mxu0 %v644
    %1296 = vmatpush1.bf16.msra.mxu0 %v643
    %1297 = vmatprep.subr.bf16.mxu0 %v648
    %1298 = vmatpush1.bf16.msra.mxu0 %v647
    %1299 = vmatprep.subr.bf16.mxu0 %v652
    %1300 = vmatpush1.bf16.msra.mxu0 %v651
    %1301 = vmatprep.subr.bf16.mxu0 %v656
    %1302 = vmatpush1.bf16.msra.mxu0 %v655
    %1303 = vmatprep.subr.bf16.mxu0 %v660
    %1304 = vmatpush1.bf16.msra.mxu0 %v659
    %1305 = vmatprep.subr.bf16.mxu0 %v664
    %1306 = vmatpush1.bf16.msra.mxu0 %v663
    %1307 = vmatprep.subr.bf16.mxu0 %v668
    %1308 = vmatpush1.bf16.msra.mxu0 %v667
    %1309 = vmatprep.subr.bf16.mxu0 0
    %1310 = vmatpush1.bf16.msra.mxu0 0
    %1311 = vmatprep.subr.bf16.mxu0 0
    %1312 = vmatpush1.bf16.msra.mxu0 0
    %1313 = vmatprep.subr.bf16.mxu0 0
    %1314 = vmatpush1.bf16.msra.mxu0 0
    %1315 = vmatprep.subr.bf16.mxu0 0
    %1316 = vmatpush1.bf16.msra.mxu0 0
    %1317 = vmatprep.subr.bf16.mxu0 0
    %1318 = vmatpush1.bf16.msra.mxu0 0
    %1319 = vmatprep.subr.bf16.mxu0 0
    %1320 = vmatpush1.bf16.msra.mxu0 0
    %1321 = vmatprep.subr.bf16.mxu0 0
    %1322 = vmatpush1.bf16.msra.mxu0 0
    %1323 = vmatprep.subr.bf16.mxu0 0
    %1324 = vmatpush1.bf16.msra.mxu0 0
    %1325 = vmatprep.mubr.bf16.mxu0 0
    %1326 = vmatmul.mubr.bf16.gmra.mrb[0].mxu0 %v1292
    %v1327 = vpop.f32.mrb[0].mxu0
    %v1328 = vadd.f32 0.0, %v1327
    %v1329 = vpop.f32.mrb[0].mxu0
    %v1330 = vadd.f32 0.0, %v1329
    %v1331 = vpop.f32.mrb[0].mxu0
    %v1332 = vpop.f32.mrb[0].mxu0
    %1333 = vdwg.mxu0
    %1334 = vmatprep.subr.bf16.mxu0 %v642
    %1335 = vmatpush1.bf16.msra.mxu0 %v641
    %1336 = vmatprep.subr.bf16.mxu0 %v646
    %1337 = vmatpush1.bf16.msra.mxu0 %v645
    %1338 = vmatprep.subr.bf16.mxu0 %v650
    %1339 = vmatpush1.bf16.msra.mxu0 %v649
    %1340 = vmatprep.subr.bf16.mxu0 %v654
    %1341 = vmatpush1.bf16.msra.mxu0 %v653
    %1342 = vmatprep.subr.bf16.mxu0 %v658
    %1343 = vmatpush1.bf16.msra.mxu0 %v657
    %1344 = vmatprep.subr.bf16.mxu0 %v662
    %1345 = vmatpush1.bf16.msra.mxu0 %v661
    %1346 = vmatprep.subr.bf16.mxu0 %v666
    %1347 = vmatpush1.bf16.msra.mxu0 %v665
    %1348 = vmatprep.subr.bf16.mxu0 %v670
    %1349 = vmatpush1.bf16.msra.mxu0 %v669
    %1350 = vmatprep.subr.bf16.mxu0 0
    %1351 = vmatpush1.bf16.msra.mxu0 0
    %1352 = vmatprep.subr.bf16.mxu0 0
    %1353 = vmatpush1.bf16.msra.mxu0 0
    %1354 = vmatprep.subr.bf16.mxu0 0
    %1355 = vmatpush1.bf16.msra.mxu0 0
    %1356 = vmatprep.subr.bf16.mxu0 0
    %1357 = vmatpush1.bf16.msra.mxu0 0
    %1358 = vmatprep.subr.bf16.mxu0 0
    %1359 = vmatpush1.bf16.msra.mxu0 0
    %1360 = vmatprep.subr.bf16.mxu0 0
    %1361 = vmatpush1.bf16.msra.mxu0 0
    %1362 = vmatprep.subr.bf16.mxu0 0
    %1363 = vmatpush1.bf16.msra.mxu0 0
    %1364 = vmatprep.subr.bf16.mxu0 0
    %1365 = vmatpush1.bf16.msra.mxu0 0
    %1366 = vmatprep.mubr.bf16.mxu0 0
    %1367 = vmatmul.mubr.bf16.gmra.mrb[0].mxu0 %v1292
    %v1368 = vpop.f32.mrb[0].mxu0
    %v1369 = vadd.f32 0.0, %v1368
    %v1370 = vpop.f32.mrb[0].mxu0
    %v1371 = vadd.f32 0.0, %v1370
    %v1372 = vpop.f32.mrb[0].mxu0
    %v1373 = vpop.f32.mrb[0].mxu0
    %1374 = vdwg.mxu0
    %v1375 = vadd.f32 %v1288, %v1328
    %v1376 = vadd.f32 %v1289, %v1330
    %v1377 = vadd.f32 %v1290, %v1369
    %v1378 = vadd.f32 %v1291, %v1371
    %v1379 = vxor.u32 %v1375, 2147483648
    %v1380 = vmul.f32 %v1379, 1.442695
    %v1381 = vpow.pop %v1380
    %v1382 = vadd.f32 %v1381, 1.0
    %v1383 = vrcp.pop %v1382
    %v1384 = vmul.f32 1.0, %v1383
    %v1385 = vxor.u32 %v1376, 2147483648
    %v1386 = vmul.f32 %v1385, 1.442695
    %v1387 = vpow.pop %v1386
    %v1388 = vadd.f32 %v1387, 1.0
    %v1389 = vrcp.pop %v1388
    %v1390 = vmul.f32 1.0, %v1389
    %v1391 = vtanh.pop %v1377
    %v1392 = vxor.u32 %v1378, 2147483648
    %v1393 = vmul.f32 %v1392, 1.442695
    %v1394 = vpow.pop %v1393
    %v1395 = vadd.f32 %v1394, 1.0
    %v1396 = vrcp.pop %v1395
    %v1397 = vmul.f32 1.0, %v1396
    %v1398 = vmul.f32 %v1390, %v1282
    %v1399 = vmul.f32 %v1384, %v1391
    %v1400 = vadd.f32 %v1398, %v1399
    %v1401 = vtanh.pop %v1400
    %v1402 = vmul.f32 %v1397, %v1401
    %s1403 = smul.u32 6, 4
    %s1404 = smul.addr %s1403, 8
    %s1405 = scalar_lea.vmem [#allocation2], %s1404
    %v1406 = vld [vmem:[%s1405] sm:$0xff]
    %v1407 = vld [vmem:[%s1405 + $0x8] sm:$0xff]
    %v1408 = vld [vmem:[%s1405 + $0x10] sm:$0xff]
    %v1409 = vld [vmem:[%s1405 + $0x18] sm:$0xff]
    %v1410 = vpack.c.bf16 %v1402, %v1402
    %1411 = vmatprep.subr.bf16.mxu0 %v640
    %1412 = vmatpush1.bf16.msra.mxu0 %v639
    %1413 = vmatprep.subr.bf16.mxu0 %v644
    %1414 = vmatpush1.bf16.msra.mxu0 %v643
    %1415 = vmatprep.subr.bf16.mxu0 %v648
    %1416 = vmatpush1.bf16.msra.mxu0 %v647
    %1417 = vmatprep.subr.bf16.mxu0 %v652
    %1418 = vmatpush1.bf16.msra.mxu0 %v651
    %1419 = vmatprep.subr.bf16.mxu0 %v656
    %1420 = vmatpush1.bf16.msra.mxu0 %v655
    %1421 = vmatprep.subr.bf16.mxu0 %v660
    %1422 = vmatpush1.bf16.msra.mxu0 %v659
    %1423 = vmatprep.subr.bf16.mxu0 %v664
    %1424 = vmatpush1.bf16.msra.mxu0 %v663
    %1425 = vmatprep.subr.bf16.mxu0 %v668
    %1426 = vmatpush1.bf16.msra.mxu0 %v667
    %1427 = vmatprep.subr.bf16.mxu0 0
    %1428 = vmatpush1.bf16.msra.mxu0 0
    %1429 = vmatprep.subr.bf16.mxu0 0
    %1430 = vmatpush1.bf16.msra.mxu0 0
    %1431 = vmatprep.subr.bf16.mxu0 0
    %1432 = vmatpush1.bf16.msra.mxu0 0
    %1433 = vmatprep.subr.bf16.mxu0 0
    %1434 = vmatpush1.bf16.msra.mxu0 0
    %1435 = vmatprep.subr.bf16.mxu0 0
    %1436 = vmatpush1.bf16.msra.mxu0 0
    %1437 = vmatprep.subr.bf16.mxu0 0
    %1438 = vmatpush1.bf16.msra.mxu0 0
    %1439 = vmatprep.subr.bf16.mxu0 0
    %1440 = vmatpush1.bf16.msra.mxu0 0
    %1441 = vmatprep.subr.bf16.mxu0 0
    %1442 = vmatpush1.bf16.msra.mxu0 0
    %1443 = vmatprep.mubr.bf16.mxu0 0
    %1444 = vmatmul.mubr.bf16.gmra.mrb[0].mxu0 %v1410
    %v1445 = vpop.f32.mrb[0].mxu0
    %v1446 = vadd.f32 0.0, %v1445
    %v1447 = vpop.f32.mrb[0].mxu0
    %v1448 = vadd.f32 0.0, %v1447
    %v1449 = vpop.f32.mrb[0].mxu0
    %v1450 = vpop.f32.mrb[0].mxu0
    %1451 = vdwg.mxu0
    %1452 = vmatprep.subr.bf16.mxu0 %v642
    %1453 = vmatpush1.bf16.msra.mxu0 %v641
    %1454 = vmatprep.subr.bf16.mxu0 %v646
    %1455 = vmatpush1.bf16.msra.mxu0 %v645
    %1456 = vmatprep.subr.bf16.mxu0 %v650
    %1457 = vmatpush1.bf16.msra.mxu0 %v649
    %1458 = vmatprep.subr.bf16.mxu0 %v654
    %1459 = vmatpush1.bf16.msra.mxu0 %v653
    %1460 = vmatprep.subr.bf16.mxu0 %v658
    %1461 = vmatpush1.bf16.msra.mxu0 %v657
    %1462 = vmatprep.subr.bf16.mxu0 %v662
    %1463 = vmatpush1.bf16.msra.mxu0 %v661
    %1464 = vmatprep.subr.bf16.mxu0 %v666
    %1465 = vmatpush1.bf16.msra.mxu0 %v665
    %1466 = vmatprep.subr.bf16.mxu0 %v670
    %1467 = vmatpush1.bf16.msra.mxu0 %v669
    %1468 = vmatprep.subr.bf16.mxu0 0
    %1469 = vmatpush1.bf16.msra.mxu0 0
    %1470 = vmatprep.subr.bf16.mxu0 0
    %1471 = vmatpush1.bf16.msra.mxu0 0
    %1472 = vmatprep.subr.bf16.mxu0 0
    %1473 = vmatpush1.bf16.msra.mxu0 0
    %1474 = vmatprep.subr.bf16.mxu0 0
    %1475 = vmatpush1.bf16.msra.mxu0 0
    %1476 = vmatprep.subr.bf16.mxu0 0
    %1477 = vmatpush1.bf16.msra.mxu0 0
    %1478 = vmatprep.subr.bf16.mxu0 0
    %1479 = vmatpush1.bf16.msra.mxu0 0
    %1480 = vmatprep.subr.bf16.mxu0 0
    %1481 = vmatpush1.bf16.msra.mxu0 0
    %1482 = vmatprep.subr.bf16.mxu0 0
    %1483 = vmatpush1.bf16.msra.mxu0 0
    %1484 = vmatprep.mubr.bf16.mxu0 0
    %1485 = vmatmul.mubr.bf16.gmra.mrb[0].mxu0 %v1410
    %v1486 = vpop.f32.mrb[0].mxu0
    %v1487 = vadd.f32 0.0, %v1486
    %v1488 = vpop.f32.mrb[0].mxu0
    %v1489 = vadd.f32 0.0, %v1488
    %v1490 = vpop.f32.mrb[0].mxu0
    %v1491 = vpop.f32.mrb[0].mxu0
    %1492 = vdwg.mxu0
    %v1493 = vadd.f32 %v1406, %v1446
    %v1494 = vadd.f32 %v1407, %v1448
    %v1495 = vadd.f32 %v1408, %v1487
    %v1496 = vadd.f32 %v1409, %v1489
    %v1497 = vxor.u32 %v1493, 2147483648
    %v1498 = vmul.f32 %v1497, 1.442695
    %v1499 = vpow.pop %v1498
    %v1500 = vadd.f32 %v1499, 1.0
    %v1501 = vrcp.pop %v1500
    %v1502 = vmul.f32 1.0, %v1501
    %v1503 = vxor.u32 %v1494, 2147483648
    %v1504 = vmul.f32 %v1503, 1.442695
    %v1505 = vpow.pop %v1504
    %v1506 = vadd.f32 %v1505, 1.0
    %v1507 = vrcp.pop %v1506
    %v1508 = vmul.f32 1.0, %v1507
    %v1509 = vtanh.pop %v1495
    %v1510 = vxor.u32 %v1496, 2147483648
    %v1511 = vmul.f32 %v1510, 1.442695
    %v1512 = vpow.pop %v1511
    %v1513 = vadd.f32 %v1512, 1.0
    %v1514 = vrcp.pop %v1513
    %v1515 = vmul.f32 1.0, %v1514
    %v1516 = vmul.f32 %v1508, %v1400
    %v1517 = vmul.f32 %v1502, %v1509
    %v1518 = vadd.f32 %v1516, %v1517
    %v1519 = vtanh.pop %v1518
    %v1520 = vmul.f32 %v1515, %v1519
    %s1521 = smul.u32 7, 4
    %s1522 = smul.addr %s1521, 8
    %s1523 = scalar_lea.vmem [#allocation2], %s1522
    %v1524 = vld [vmem:[%s1523] sm:$0xff]
    %v1525 = vld [vmem:[%s1523 + $0x8] sm:$0xff]
    %v1526 = vld [vmem:[%s1523 + $0x10] sm:$0xff]
    %v1527 = vld [vmem:[%s1523 + $0x18] sm:$0xff]
    %v1528 = vpack.c.bf16 %v1520, %v1520
    %1529 = vmatprep.subr.bf16.mxu0 %v640
    %1530 = vmatpush1.bf16.msra.mxu0 %v639
    %1531 = vmatprep.subr.bf16.mxu0 %v644
    %1532 = vmatpush1.bf16.msra.mxu0 %v643
    %1533 = vmatprep.subr.bf16.mxu0 %v648
    %1534 = vmatpush1.bf16.msra.mxu0 %v647
    %1535 = vmatprep.subr.bf16.mxu0 %v652
    %1536 = vmatpush1.bf16.msra.mxu0 %v651
    %1537 = vmatprep.subr.bf16.mxu0 %v656
    %1538 = vmatpush1.bf16.msra.mxu0 %v655
    %1539 = vmatprep.subr.bf16.mxu0 %v660
    %1540 = vmatpush1.bf16.msra.mxu0 %v659
    %1541 = vmatprep.subr.bf16.mxu0 %v664
    %1542 = vmatpush1.bf16.msra.mxu0 %v663
    %1543 = vmatprep.subr.bf16.mxu0 %v668
    %1544 = vmatpush1.bf16.msra.mxu0 %v667
    %1545 = vmatprep.subr.bf16.mxu0 0
    %1546 = vmatpush1.bf16.msra.mxu0 0
    %1547 = vmatprep.subr.bf16.mxu0 0
    %1548 = vmatpush1.bf16.msra.mxu0 0
    %1549 = vmatprep.subr.bf16.mxu0 0
    %1550 = vmatpush1.bf16.msra.mxu0 0
    %1551 = vmatprep.subr.bf16.mxu0 0
    %1552 = vmatpush1.bf16.msra.mxu0 0
    %1553 = vmatprep.subr.bf16.mxu0 0
    %1554 = vmatpush1.bf16.msra.mxu0 0
    %1555 = vmatprep.subr.bf16.mxu0 0
    %1556 = vmatpush1.bf16.msra.mxu0 0
    %1557 = vmatprep.subr.bf16.mxu0 0
    %1558 = vmatpush1.bf16.msra.mxu0 0
    %1559 = vmatprep.subr.bf16.mxu0 0
    %1560 = vmatpush1.bf16.msra.mxu0 0
    %1561 = vmatprep.mubr.bf16.mxu0 0
    %1562 = vmatmul.mubr.bf16.gmra.mrb[0].mxu0 %v1528
    %v1563 = vpop.f32.mrb[0].mxu0
    %v1564 = vadd.f32 0.0, %v1563
    %v1565 = vpop.f32.mrb[0].mxu0
    %v1566 = vadd.f32 0.0, %v1565
    %v1567 = vpop.f32.mrb[0].mxu0
    %v1568 = vpop.f32.mrb[0].mxu0
    %1569 = vdwg.mxu0
    %1570 = vmatprep.subr.bf16.mxu0 %v642
    %1571 = vmatpush1.bf16.msra.mxu0 %v641
    %1572 = vmatprep.subr.bf16.mxu0 %v646
    %1573 = vmatpush1.bf16.msra.mxu0 %v645
    %1574 = vmatprep.subr.bf16.mxu0 %v650
    %1575 = vmatpush1.bf16.msra.mxu0 %v649
    %1576 = vmatprep.subr.bf16.mxu0 %v654
    %1577 = vmatpush1.bf16.msra.mxu0 %v653
    %1578 = vmatprep.subr.bf16.mxu0 %v658
    %1579 = vmatpush1.bf16.msra.mxu0 %v657
    %1580 = vmatprep.subr.bf16.mxu0 %v662
    %1581 = vmatpush1.bf16.msra.mxu0 %v661
    %1582 = vmatprep.subr.bf16.mxu0 %v666
    %1583 = vmatpush1.bf16.msra.mxu0 %v665
    %1584 = vmatprep.subr.bf16.mxu0 %v670
    %1585 = vmatpush1.bf16.msra.mxu0 %v669
    %1586 = vmatprep.subr.bf16.mxu0 0
    %1587 = vmatpush1.bf16.msra.mxu0 0
    %1588 = vmatprep.subr.bf16.mxu0 0
    %1589 = vmatpush1.bf16.msra.mxu0 0
    %1590 = vmatprep.subr.bf16.mxu0 0
    %1591 = vmatpush1.bf16.msra.mxu0 0
    %1592 = vmatprep.subr.bf16.mxu0 0
    %1593 = vmatpush1.bf16.msra.mxu0 0
    %1594 = vmatprep.subr.bf16.mxu0 0
    %1595 = vmatpush1.bf16.msra.mxu0 0
    %1596 = vmatprep.subr.bf16.mxu0 0
    %1597 = vmatpush1.bf16.msra.mxu0 0
    %1598 = vmatprep.subr.bf16.mxu0 0
    %1599 = vmatpush1.bf16.msra.mxu0 0
    %1600 = vmatprep.subr.bf16.mxu0 0
    %1601 = vmatpush1.bf16.msra.mxu0 0
    %1602 = vmatprep.mubr.bf16.mxu0 0
    %1603 = vmatmul.mubr.bf16.gmra.mrb[0].mxu0 %v1528
    %v1604 = vpop.f32.mrb[0].mxu0
    %v1605 = vadd.f32 0.0, %v1604
    %v1606 = vpop.f32.mrb[0].mxu0
    %v1607 = vadd.f32 0.0, %v1606
    %v1608 = vpop.f32.mrb[0].mxu0
    %v1609 = vpop.f32.mrb[0].mxu0
    %1610 = vdwg.mxu0
    %v1611 = vadd.f32 %v1524, %v1564
    %v1612 = vadd.f32 %v1525, %v1566
    %v1613 = vadd.f32 %v1526, %v1605
    %v1614 = vadd.f32 %v1527, %v1607
    %v1615 = vxor.u32 %v1611, 2147483648
    %v1616 = vmul.f32 %v1615, 1.442695
    %v1617 = vpow.pop %v1616
    %v1618 = vadd.f32 %v1617, 1.0
    %v1619 = vrcp.pop %v1618
    %v1620 = vmul.f32 1.0, %v1619
    %v1621 = vxor.u32 %v1612, 2147483648
    %v1622 = vmul.f32 %v1621, 1.442695
    %v1623 = vpow.pop %v1622
    %v1624 = vadd.f32 %v1623, 1.0
    %v1625 = vrcp.pop %v1624
    %v1626 = vmul.f32 1.0, %v1625
    %v1627 = vtanh.pop %v1613
    %v1628 = vxor.u32 %v1614, 2147483648
    %v1629 = vmul.f32 %v1628, 1.442695
    %v1630 = vpow.pop %v1629
    %v1631 = vadd.f32 %v1630, 1.0
    %v1632 = vrcp.pop %v1631
    %v1633 = vmul.f32 1.0, %v1632
    %v1634 = vmul.f32 %v1626, %v1518
    %v1635 = vmul.f32 %v1620, %v1627
    %v1636 = vadd.f32 %v1634, %v1635
    %v1637 = vtanh.pop %v1636
    %v1638 = vmul.f32 %v1633, %v1637
    %v1639 = vld [vmem:[#allocation9] sm:$0xff]
    %v1640 = vld [vmem:[#allocation9 + $0x8] sm:$0xff]
    %v1641 = vld [vmem:[#allocation9 + $0x10] sm:$0xff]
    %v1642 = vld [vmem:[#allocation9 + $0x18] sm:$0xff]
    %v1643 = vld [vmem:[#allocation9 + $0x20] sm:$0xff]
    %v1644 = vld [vmem:[#allocation9 + $0x28] sm:$0xff]
    %v1645 = vld [vmem:[#allocation9 + $0x30] sm:$0xff]
    %v1646 = vld [vmem:[#allocation9 + $0x38] sm:$0xff]
    %v1647 = vld [vmem:[#allocation9 + $0x40] sm:$0xff]
    %v1648 = vld [vmem:[#allocation9 + $0x48] sm:$0xff]
    %v1649 = vld [vmem:[#allocation9 + $0x50] sm:$0xff]
    %v1650 = vld [vmem:[#allocation9 + $0x58] sm:$0xff]
    %v1651 = vld [vmem:[#allocation9 + $0x60] sm:$0xff]
    %v1652 = vld [vmem:[#allocation9 + $0x68] sm:$0xff]
    %v1653 = vld [vmem:[#allocation9 + $0x70] sm:$0xff]
    %v1654 = vld [vmem:[#allocation9 + $0x78] sm:$0xff]
    %v1655 = vld [vmem:[%s5] sm:$0x1]
    %v1657 = vlaneseq
    %v1658 = vshrl.u32 %v1657, 7
    %v1659 = vsub.s32 0, %v1658
    %v1660 = vrot.slane %v1655, %v1659
    %1662 = vmatprep.subr.mxu0 0.0
    %1663 = vmatpush1.msra.mxu0 %v1639
    %1664 = vmatprep.subr.mxu0 0.0
    %1665 = vmatpush1.msra.mxu0 %v1640
    %1666 = vmatprep.subr.mxu0 0.0
    %1667 = vmatpush1.msra.mxu0 %v1641
    %1668 = vmatprep.subr.mxu0 0.0
    %1669 = vmatpush1.msra.mxu0 %v1642
    %1670 = vmatprep.subr.mxu0 0.0
    %1671 = vmatpush1.msra.mxu0 %v1643
    %1672 = vmatprep.subr.mxu0 0.0
    %1673 = vmatpush1.msra.mxu0 %v1644
    %1674 = vmatprep.subr.mxu0 0.0
    %1675 = vmatpush1.msra.mxu0 %v1645
    %1676 = vmatprep.subr.mxu0 0.0
    %1677 = vmatpush1.msra.mxu0 %v1646
    %1678 = vmatprep.subr.mxu0 0.0
    %1679 = vmatpush1.msra.mxu0 %v1647
    %1680 = vmatprep.subr.mxu0 0.0
    %1681 = vmatpush1.msra.mxu0 %v1648
    %1682 = vmatprep.subr.mxu0 0.0
    %1683 = vmatpush1.msra.mxu0 %v1649
    %1684 = vmatprep.subr.mxu0 0.0
    %1685 = vmatpush1.msra.mxu0 %v1650
    %1686 = vmatprep.subr.mxu0 0.0
    %1687 = vmatpush1.msra.mxu0 %v1651
    %1688 = vmatprep.subr.mxu0 0.0
    %1689 = vmatpush1.msra.mxu0 %v1652
    %1690 = vmatprep.subr.mxu0 0.0
    %1691 = vmatpush1.msra.mxu0 %v1653
    %1692 = vmatprep.subr.mxu0 0.0
    %1693 = vmatpush1.msra.mxu0 %v1654
    %1694 = vmatprep.subr.mxu0 0.0
    %1695 = vmatpush1.msra.mxu0 0.0
    %1696 = vmatprep.subr.mxu0 0.0
    %1697 = vmatpush1.msra.mxu0 0.0
    %1698 = vmatprep.subr.mxu0 0.0
    %1699 = vmatpush1.msra.mxu0 0.0
    %1700 = vmatprep.subr.mxu0 0.0
    %1701 = vmatpush1.msra.mxu0 0.0
    %1702 = vmatprep.subr.mxu0 0.0
    %1703 = vmatpush1.msra.mxu0 0.0
    %1704 = vmatprep.subr.mxu0 0.0
    %1705 = vmatpush1.msra.mxu0 0.0
    %1706 = vmatprep.subr.mxu0 0.0
    %1707 = vmatpush1.msra.mxu0 0.0
    %1708 = vmatprep.subr.mxu0 0.0
    %1709 = vmatpush1.msra.mxu0 0.0
    %1710 = vmatprep.subr.mxu0 0.0
    %1711 = vmatpush1.msra.mxu0 0.0
    %1712 = vmatprep.subr.mxu0 0.0
    %1713 = vmatpush1.msra.mxu0 0.0
    %1714 = vmatprep.subr.mxu0 0.0
    %1715 = vmatpush1.msra.mxu0 0.0
    %1716 = vmatprep.subr.mxu0 0.0
    %1717 = vmatpush1.msra.mxu0 0.0
    %1718 = vmatprep.subr.mxu0 0.0
    %1719 = vmatpush1.msra.mxu0 0.0
    %1720 = vmatprep.subr.mxu0 0.0
    %1721 = vmatpush1.msra.mxu0 0.0
    %1722 = vmatprep.subr.mxu0 0.0
    %1723 = vmatpush1.msra.mxu0 0.0
    %1724 = vmatprep.subr.mxu0 0.0
    %1725 = vmatpush1.msra.mxu0 0.0
    %1726 = vmatprep.mubr.f32.mxu0 0.0
    %1727 = vmatmul.mubr.f32.gmra.mrb[0].mxu0 %v1638
    %v1728 = vpop.f32.mrb[0].mxu0
    %v1729 = vadd.f32 %v1660, %v1728
    %v1730 = vpop.f32.mrb[0].mxu0
    %1731 = vdwg.mxu0
    %1732 = vst [vmem:[#allocation11] sm:$0xff] %v1729
    // Predicated region
    $region42: #{tpu_custom_call.1} parent=1 // pred_check
      _
    $region43: #{tpu_custom_call.1} parent=1 // pred_check_branch
      %1734 = sbr.rel (0) target = $region45
    $region44: #{tpu_custom_call.1} parent=1 // pred_region
      %s1736 = ssub.s32 128, 128
      %1737 = vsyncadd [#allocation5], %s1736
      %s1739 = sshll.u32 [#allocation11], 4
      %s1740 = int_to_ptr.vmem [resolvable:$true] %s1739
      %1742 = dma.vmem_to_hbm [thread:$0]  %s1740, 128, %s6, [#allocation5]
    $region45: #{tpu_custom_call.1} parent=1 // pred_fallthru
      _
    // Predicated region
    $region46: #{tpu_custom_call.1} parent=1 // pred_check
      _
    $region47: #{tpu_custom_call.1} parent=1 // pred_check_branch
      %1744 = sbr.rel (0) target = $region49
    $region48: #{tpu_custom_call.1} parent=1 // pred_region
      %1745 = dma.done [#allocation5], 128
    $region49: #{tpu_custom_call.1} parent=1 // pred_fallthru
      _
    %1746 = vsyncpa [#allocation4], 1
    %1747 = vsyncpa [#allocation7], 1
    %1748 = vsyncpa [#allocation10], 1
    %1749 = vsyncpa [#allocation5], 1

</llo_original>
